<compile_context>
chip_gen: v5e
topology: v5e:2x2
jax: 0.10.0
libtpu: 0.0.40
codegen_flags: <defaults>
</compile_context>

<pallas_src>
import functools

import jax
import jax.numpy as jnp
from jax.experimental import pallas as pl
from jax.experimental.pallas import tpu as pltpu  # noqa: F401  (TPU backend)

# ---- tiny GPT-2 config (synthetic, deterministic init) ----
VOCAB = 64
VOCAB_PAD = 128       # lane-dense LM-head output width (pad columns are zero weights)
MAX_POS = 16
D = 32                # hidden size
N_HEAD = 2
HEAD_DIM = D // N_HEAD
N_LAYER = 2
D_FF = 4 * D
LN_EPS = 1e-5
NEG_INF = -1e9


def _layernorm(x, g, b):
    mean = jnp.mean(x, axis=-1, keepdims=True)
    var = jnp.mean((x - mean) ** 2, axis=-1, keepdims=True)
    return (x - mean) * jax.lax.rsqrt(var + LN_EPS) * g + b


def _gelu_new(x):
    # GPT-2 "gelu_new"
    return 0.5 * x * (1.0 + jnp.tanh(0.7978845608028654 * (x + 0.044715 * x * x * x)))


# ---------------- fused Pallas kernel ----------------

def gpt2_fused_kernel(h_ref, mask_ref,
                      ln1g_ref, ln1b_ref, wqkv_ref, bqkv_ref, wproj_ref, bproj_ref,
                      ln2g_ref, ln2b_ref, wfc_ref, bfc_ref, wout_ref, bout_ref,
                      lnfg_ref, lnfb_ref, wteT_ref,
                      o_ref, *, batch, seq):
    """Entire GPT-2 forward for all batch rows at once.

    h_ref:    [B*S, D]          f32 embedded hidden states (residual stream, stays in VMEM)
    mask_ref: [1, B*S, B*S]     f32 additive attention mask (0 or NEG_INF), precomputed in wrapper
    stacked per-layer weights:  leading N_LAYER axis; matrices bf16, biases/LN params f32
    o_ref:    [B*S, VOCAB_PAD]  f32 lane-dense logits slab
    """
    bs = batch * seq
    x = h_ref[...]                                     # [BS, D] f32
    add_mask = mask_ref[...]                           # [1, BS, BS], broadcasts over heads

    scale = HEAD_DIM ** -0.5

    for li in range(N_LAYER):                          # unrolled layer loop (N_LAYER static)
        # ---- attention ----
        ln1 = _layernorm(x, ln1g_ref[li], ln1b_ref[li])
        qkv = (jnp.dot(ln1.astype(jnp.bfloat16), wqkv_ref[li],
                       preferred_element_type=jnp.float32)
               + bqkv_ref[li])                         # [BS, 3D] f32

        # heads on a leading (non-lane) axis: [N_HEAD, BS, HEAD_DIM]
        q = qkv[:, :D].reshape(bs, N_HEAD, HEAD_DIM).transpose(1, 0, 2)
        k = qkv[:, D:2 * D].reshape(bs, N_HEAD, HEAD_DIM).transpose(1, 0, 2)
        v = qkv[:, 2 * D:].reshape(bs, N_HEAD, HEAD_DIM).transpose(1, 0, 2)

        s = jnp.einsum("hqd,hkd->hqk",
                       q.astype(jnp.bfloat16), k.astype(jnp.bfloat16),
                       preferred_element_type=jnp.float32) * scale     # [H, BS, BS]
        s = s + add_mask
        m = jnp.max(s, axis=-1, keepdims=True)
        p = jnp.exp(s - m)
        p = p * pl.reciprocal(jnp.sum(p, axis=-1, keepdims=True), approx=True)

        ctx = jnp.einsum("hqk,hkd->hqd",
                         p.astype(jnp.bfloat16), v.astype(jnp.bfloat16),
                         preferred_element_type=jnp.float32)            # [H, BS, hd]
        attn = ctx.transpose(1, 0, 2).reshape(bs, D)                    # [BS, D]
        attn = (jnp.dot(attn.astype(jnp.bfloat16), wproj_ref[li],
                        preferred_element_type=jnp.float32)
                + bproj_ref[li])
        x = x + attn

        # ---- MLP ----
        ln2 = _layernorm(x, ln2g_ref[li], ln2b_ref[li])
        hfc = (jnp.dot(ln2.astype(jnp.bfloat16), wfc_ref[li],
                       preferred_element_type=jnp.float32)
               + bfc_ref[li])
        hfc = _gelu_new(hfc)
        mlp = (jnp.dot(hfc.astype(jnp.bfloat16), wout_ref[li],
                       preferred_element_type=jnp.float32)
               + bout_ref[li])
        x = x + mlp

    # ---- final LayerNorm + tied LM head (lane-dense padded vocab) ----
    # TODO(synk): at real GPT-2 sizes (S~1024, VOCAB~50k) tile the LM head over the vocab dim
    #             (second grid axis) instead of one full-vocab output block (v7x 64 MiB VMEM).
    xn = _layernorm(x, lnfg_ref[...], lnfb_ref[...])
    o_ref[...] = jnp.dot(xn.astype(jnp.bfloat16), wteT_ref[...],
                         preferred_element_type=jnp.float32)            # [BS, VOCAB_PAD]


# ---------------- wrapper ----------------

@jax.jit
def gpt2_forward(input_ids, attention_mask, params):
    """Wrapper.forward(input_ids, attention_mask) == model(input_ids, None, attention_mask)."""
    B, S = input_ids.shape
    BS = B * S

    # embedding gather (plain-JAX glue, not the hot path)
    h = jnp.take(params["wte"], input_ids, axis=0) + params["wpe"][:S]
    h = h.reshape(BS, D).astype(jnp.float32)

    # precompute additive attention mask once (plain-JAX glue):
    # same-batch (block diagonal) AND causal AND key not padded -> 0, else NEG_INF
    row = jax.lax.broadcasted_iota(jnp.int32, (BS, BS), 0)
    col = jax.lax.broadcasted_iota(jnp.int32, (BS, BS), 1)
    keep = jnp.logical_and(row // S == col // S, col <= row)
    key_bias = ((1.0 - attention_mask.astype(jnp.float32)) * NEG_INF).reshape(1, BS)
    add_mask = (jnp.where(keep, 0.0, NEG_INF) + key_bias).reshape(1, BS, BS)

    logits_pad = pl.pallas_call(
        functools.partial(gpt2_fused_kernel, batch=B, seq=S),
        out_shape=jax.ShapeDtypeStruct((BS, VOCAB_PAD), jnp.float32),
    )(h, add_mask,
      params["ln1_g"], params["ln1_b"], params["w_qkv"], params["b_qkv"],
      params["w_proj"], params["b_proj"],
      params["ln2_g"], params["ln2_b"], params["w_fc"], params["b_fc"],
      params["w_out"], params["b_out"],
      params["lnf_g"], params["lnf_b"], params["wte_T"])

    return logits_pad[:, :VOCAB].reshape(B, S, VOCAB)


# ---------------- deterministic parameter init ----------------

def init_params(key):
    def nrm(k, shape, scale=0.02):
        return (scale * jax.random.normal(k, shape)).astype(jnp.float32)

    keys = jax.random.split(key, 2 + N_LAYER)
    wte = nrm(keys[0], (VOCAB, D))
    wpe = nrm(keys[1], (MAX_POS, D))

    w_qkv, w_proj, w_fc, w_out = [], [], [], []
    for li in range(N_LAYER):
        k = jax.random.split(keys[2 + li], 4)
        w_qkv.append(nrm(k[0], (D, 3 * D)))
        w_proj.append(nrm(k[1], (D, D)))
        w_fc.append(nrm(k[2], (D, D_FF)))
        w_out.append(nrm(k[3], (D_FF, D)))

    # tied LM head, padded to a lane-dense 128 columns (pad cols are zero)
    wte_T_pad = jnp.zeros((D, VOCAB_PAD), jnp.float32).at[:, :VOCAB].set(wte.T)

    return {
        "wte": wte,                                   # f32 for the embedding gather
        "wpe": wpe,
        "ln1_g": jnp.ones((N_LAYER, 1, D), jnp.float32),
        "ln1_b": jnp.zeros((N_LAYER, 1, D), jnp.float32),
        "w_qkv": jnp.stack(w_qkv).astype(jnp.bfloat16),
        "b_qkv": jnp.zeros((N_LAYER, 1, 3 * D), jnp.float32),
        "w_proj": jnp.stack(w_proj).astype(jnp.bfloat16),
        "b_proj": jnp.zeros((N_LAYER, 1, D), jnp.float32),
        "ln2_g": jnp.ones((N_LAYER, 1, D), jnp.float32),
        "ln2_b": jnp.zeros((N_LAYER, 1, D), jnp.float32),
        "w_fc": jnp.stack(w_fc).astype(jnp.bfloat16),
        "b_fc": jnp.zeros((N_LAYER, 1, D_FF), jnp.float32),
        "w_out": jnp.stack(w_out).astype(jnp.bfloat16),
        "b_out": jnp.zeros((N_LAYER, 1, D), jnp.float32),
        "lnf_g": jnp.ones((1, D), jnp.float32),
        "lnf_b": jnp.zeros((1, D), jnp.float32),
        "wte_T": wte_T_pad.astype(jnp.bfloat16),      # tied + padded LM head weight
    }


if __name__ == "__main__":
    key = jax.random.PRNGKey(0)
    k_ids, k_p = jax.random.split(key)

    B, S = 2, 8
    input_ids = jax.random.randint(k_ids, (B, S), 0, VOCAB, dtype=jnp.int32)
    attention_mask = jnp.ones((B, S), jnp.float32).at[1, -2:].set(0.0)   # pad last 2 tokens of batch 1

    params = init_params(k_p)

    logits = gpt2_forward(input_ids, attention_mask, params)
    jax.block_until_ready(logits)
    assert logits.shape == (B, S, VOCAB) and logits.dtype == jnp.float32
    assert bool(jnp.all(jnp.isfinite(logits)))
    print("KERNEL_OK")
</pallas_src>

<mosaic_0001>
module attributes {stable_mosaic.version = 11 : i64} {
  func.func @gpt2_fused_kernel(%arg0: memref<16x32xf32, #tpu.memory_space<vmem>>, %arg1: memref<1x16x16xf32, #tpu.memory_space<vmem>>, %arg2: memref<2x1x32xf32, #tpu.memory_space<vmem>>, %arg3: memref<2x1x32xf32, #tpu.memory_space<vmem>>, %arg4: memref<2x32x96xbf16, #tpu.memory_space<vmem>>, %arg5: memref<2x1x96xf32, #tpu.memory_space<vmem>>, %arg6: memref<2x32x32xbf16, #tpu.memory_space<vmem>>, %arg7: memref<2x1x32xf32, #tpu.memory_space<vmem>>, %arg8: memref<2x1x32xf32, #tpu.memory_space<vmem>>, %arg9: memref<2x1x32xf32, #tpu.memory_space<vmem>>, %arg10: memref<2x32x128xbf16, #tpu.memory_space<vmem>>, %arg11: memref<2x1x128xf32, #tpu.memory_space<vmem>>, %arg12: memref<2x128x32xbf16, #tpu.memory_space<vmem>>, %arg13: memref<2x1x32xf32, #tpu.memory_space<vmem>>, %arg14: memref<1x32xf32, #tpu.memory_space<vmem>>, %arg15: memref<1x32xf32, #tpu.memory_space<vmem>>, %arg16: memref<32x128xbf16, #tpu.memory_space<vmem>>, %arg17: memref<16x128xf32, #tpu.memory_space<vmem>>) attributes {dimension_semantics = [], scalar_prefetch = 0 : i64, scratch_operands = 0 : i64, tpu.core_type = #tpu.core_type<tc>} {
    %c0 = arith.constant 0 : index
    %c0_0 = arith.constant 0 : index
    %0 = vector.load %arg0[%c0, %c0_0] : memref<16x32xf32, #tpu.memory_space<vmem>>, vector<16x32xf32>
    %c0_1 = arith.constant 0 : index
    %c0_2 = arith.constant 0 : index
    %c0_3 = arith.constant 0 : index
    %1 = vector.load %arg1[%c0_1, %c0_2, %c0_3] : memref<1x16x16xf32, #tpu.memory_space<vmem>>, vector<1x16x16xf32>
    %c0_4 = arith.constant 0 : index
    %c0_5 = arith.constant 0 : index
    %c0_6 = arith.constant 0 : index
    %2 = vector.load %arg2[%c0_4, %c0_5, %c0_6] : memref<2x1x32xf32, #tpu.memory_space<vmem>>, vector<1x1x32xf32>
    %3 = vector.shape_cast %2 : vector<1x1x32xf32> to vector<1x32xf32>
    %c0_7 = arith.constant 0 : index
    %c0_8 = arith.constant 0 : index
    %c0_9 = arith.constant 0 : index
    %4 = vector.load %arg3[%c0_7, %c0_8, %c0_9] : memref<2x1x32xf32, #tpu.memory_space<vmem>>, vector<1x1x32xf32>
    %5 = vector.shape_cast %4 : vector<1x1x32xf32> to vector<1x32xf32>
    %cst = arith.constant dense<0.000000e+00> : vector<16xf32>
    %6 = vector.multi_reduction <add>, %0, %cst [1] : vector<16x32xf32> to vector<16xf32>
    %7 = vector.shape_cast %6 : vector<16xf32> to vector<16x1xf32>
    %cst_10 = arith.constant 3.200000e+01 : f32
    %8 = vector.broadcast %cst_10 : f32 to vector<16x1xf32>
    %9 = arith.divf %7, %8 : vector<16x1xf32>
    %10 = vector.broadcast %9 : vector<16x1xf32> to vector<16x32xf32>
    %11 = arith.subf %0, %10 : vector<16x32xf32>
    %12 = arith.mulf %11, %11 : vector<16x32xf32>
    %cst_11 = arith.constant dense<0.000000e+00> : vector<16xf32>
    %13 = vector.multi_reduction <add>, %12, %cst_11 [1] : vector<16x32xf32> to vector<16xf32>
    %14 = vector.shape_cast %13 : vector<16xf32> to vector<16x1xf32>
    %cst_12 = arith.constant 3.200000e+01 : f32
    %15 = vector.broadcast %cst_12 : f32 to vector<16x1xf32>
    %16 = arith.divf %14, %15 : vector<16x1xf32>
    %17 = vector.broadcast %9 : vector<16x1xf32> to vector<16x32xf32>
    %18 = arith.subf %0, %17 : vector<16x32xf32>
    %cst_13 = arith.constant 9.99999974E-6 : f32
    %19 = vector.broadcast %cst_13 : f32 to vector<16x1xf32>
    %20 = arith.addf %16, %19 : vector<16x1xf32>
    %21 = math.rsqrt %20 : vector<16x1xf32>
    %22 = vector.broadcast %21 : vector<16x1xf32> to vector<16x32xf32>
    %23 = arith.mulf %18, %22 : vector<16x32xf32>
    %24 = vector.broadcast %3 : vector<1x32xf32> to vector<16x32xf32>
    %25 = arith.mulf %23, %24 : vector<16x32xf32>
    %26 = vector.broadcast %5 : vector<1x32xf32> to vector<16x32xf32>
    %27 = arith.addf %25, %26 : vector<16x32xf32>
    %28 = arith.truncf %27 : vector<16x32xf32> to vector<16x32xbf16>
    %c0_14 = arith.constant 0 : index
    %c0_15 = arith.constant 0 : index
    %c0_16 = arith.constant 0 : index
    %29 = vector.load %arg4[%c0_14, %c0_15, %c0_16] : memref<2x32x96xbf16, #tpu.memory_space<vmem>>, vector<1x32x96xbf16>
    %30 = vector.shape_cast %29 : vector<1x32x96xbf16> to vector<32x96xbf16>
    %cst_17 = arith.constant dense<0.000000e+00> : vector<16x96xf32>
    %31 = tpu.matmul %28, %30, %cst_17 {dimension_numbers = #tpu.dot_dimension_numbers<[1], [0], [0], [1], [0, 0, 1, 1], [], []>} : vector<16x32xbf16>, vector<32x96xbf16>, vector<16x96xf32> -> vector<16x96xf32>
    %c0_18 = arith.constant 0 : index
    %c0_19 = arith.constant 0 : index
    %c0_20 = arith.constant 0 : index
    %32 = vector.load %arg5[%c0_18, %c0_19, %c0_20] : memref<2x1x96xf32, #tpu.memory_space<vmem>>, vector<1x1x96xf32>
    %33 = vector.shape_cast %32 : vector<1x1x96xf32> to vector<1x96xf32>
    %34 = vector.broadcast %33 : vector<1x96xf32> to vector<16x96xf32>
    %35 = arith.addf %31, %34 : vector<16x96xf32>
    %36 = vector.extract_strided_slice %35 {offsets = [0, 0], sizes = [16, 32], strides = [1, 1]} : vector<16x96xf32> to vector<16x32xf32>
    %37 = vector.shape_cast %36 : vector<16x32xf32> to vector<16x2x16xf32>
    %38 = tpu.transpose %37, [1, 0, 2] : vector<16x2x16xf32> -> vector<2x16x16xf32>
    %39 = vector.extract_strided_slice %35 {offsets = [0, 32], sizes = [16, 32], strides = [1, 1]} : vector<16x96xf32> to vector<16x32xf32>
    %40 = vector.shape_cast %39 : vector<16x32xf32> to vector<16x2x16xf32>
    %41 = tpu.transpose %40, [1, 0, 2] : vector<16x2x16xf32> -> vector<2x16x16xf32>
    %42 = vector.extract_strided_slice %35 {offsets = [0, 64], sizes = [16, 32], strides = [1, 1]} : vector<16x96xf32> to vector<16x32xf32>
    %43 = vector.shape_cast %42 : vector<16x32xf32> to vector<16x2x16xf32>
    %44 = tpu.transpose %43, [1, 0, 2] : vector<16x2x16xf32> -> vector<2x16x16xf32>
    %45 = arith.truncf %38 : vector<2x16x16xf32> to vector<2x16x16xbf16>
    %46 = arith.truncf %41 : vector<2x16x16xf32> to vector<2x16x16xbf16>
    "tpu.trace_start"() <{level = 10 : i32, message = "hqd,hkd->hqk"}> : () -> ()
    %cst_21 = arith.constant dense<0.000000e+00> : vector<2x16x16xf32>
    %47 = tpu.matmul %45, %46, %cst_21 {dimension_numbers = #tpu.dot_dimension_numbers<[2], [2], [1], [1], [0, 0, 0, 1, 1, 1], [0], [0]>} : vector<2x16x16xbf16>, vector<2x16x16xbf16>, vector<2x16x16xf32> -> vector<2x16x16xf32>
    "tpu.trace_stop"() : () -> ()
    %cst_22 = arith.constant 2.500000e-01 : f32
    %48 = vector.broadcast %cst_22 : f32 to vector<2x16x16xf32>
    %49 = arith.mulf %47, %48 : vector<2x16x16xf32>
    %50 = vector.broadcast %1 : vector<1x16x16xf32> to vector<2x16x16xf32>
    %51 = arith.addf %49, %50 : vector<2x16x16xf32>
    %cst_23 = arith.constant dense<0xFF800000> : vector<2x16xf32>
    %52 = vector.multi_reduction <maximumf>, %51, %cst_23 [2] : vector<2x16x16xf32> to vector<2x16xf32>
    %53 = vector.shape_cast %52 : vector<2x16xf32> to vector<2x16x1xf32>
    %54 = vector.broadcast %53 : vector<2x16x1xf32> to vector<2x16x16xf32>
    %55 = arith.subf %51, %54 : vector<2x16x16xf32>
    %56 = math.exp %55 : vector<2x16x16xf32>
    %cst_24 = arith.constant dense<0.000000e+00> : vector<2x16xf32>
    %57 = vector.multi_reduction <add>, %56, %cst_24 [2] : vector<2x16x16xf32> to vector<2x16xf32>
    %58 = vector.shape_cast %57 : vector<2x16xf32> to vector<2x16x1xf32>
    %59 = tpu.reciprocal %58 {approx = true} : vector<2x16x1xf32> -> vector<2x16x1xf32>
    %60 = vector.broadcast %59 : vector<2x16x1xf32> to vector<2x16x16xf32>
    %61 = arith.mulf %56, %60 : vector<2x16x16xf32>
    %62 = arith.truncf %61 : vector<2x16x16xf32> to vector<2x16x16xbf16>
    %63 = arith.truncf %44 : vector<2x16x16xf32> to vector<2x16x16xbf16>
    "tpu.trace_start"() <{level = 10 : i32, message = "hqk,hkd->hqd"}> : () -> ()
    %cst_25 = arith.constant dense<0.000000e+00> : vector<2x16x16xf32>
    %64 = tpu.matmul %62, %63, %cst_25 {dimension_numbers = #tpu.dot_dimension_numbers<[2], [1], [1], [2], [0, 0, 0, 1, 1, 2], [0], [0]>} : vector<2x16x16xbf16>, vector<2x16x16xbf16>, vector<2x16x16xf32> -> vector<2x16x16xf32>
    "tpu.trace_stop"() : () -> ()
    %65 = tpu.transpose %64, [1, 0, 2] : vector<2x16x16xf32> -> vector<16x2x16xf32>
    %66 = vector.shape_cast %65 : vector<16x2x16xf32> to vector<16x32xf32>
    %67 = arith.truncf %66 : vector<16x32xf32> to vector<16x32xbf16>
    %c0_26 = arith.constant 0 : index
    %c0_27 = arith.constant 0 : index
    %c0_28 = arith.constant 0 : index
    %68 = vector.load %arg6[%c0_26, %c0_27, %c0_28] : memref<2x32x32xbf16, #tpu.memory_space<vmem>>, vector<1x32x32xbf16>
    %69 = vector.shape_cast %68 : vector<1x32x32xbf16> to vector<32x32xbf16>
    %cst_29 = arith.constant dense<0.000000e+00> : vector<16x32xf32>
    %70 = tpu.matmul %67, %69, %cst_29 {dimension_numbers = #tpu.dot_dimension_numbers<[1], [0], [0], [1], [0, 0, 1, 1], [], []>} : vector<16x32xbf16>, vector<32x32xbf16>, vector<16x32xf32> -> vector<16x32xf32>
    %c0_30 = arith.constant 0 : index
    %c0_31 = arith.constant 0 : index
    %c0_32 = arith.constant 0 : index
    %71 = vector.load %arg7[%c0_30, %c0_31, %c0_32] : memref<2x1x32xf32, #tpu.memory_space<vmem>>, vector<1x1x32xf32>
    %72 = vector.shape_cast %71 : vector<1x1x32xf32> to vector<1x32xf32>
    %73 = vector.broadcast %72 : vector<1x32xf32> to vector<16x32xf32>
    %74 = arith.addf %70, %73 : vector<16x32xf32>
    %75 = arith.addf %0, %74 : vector<16x32xf32>
    %c0_33 = arith.constant 0 : index
    %c0_34 = arith.constant 0 : index
    %c0_35 = arith.constant 0 : index
    %76 = vector.load %arg8[%c0_33, %c0_34, %c0_35] : memref<2x1x32xf32, #tpu.memory_space<vmem>>, vector<1x1x32xf32>
    %77 = vector.shape_cast %76 : vector<1x1x32xf32> to vector<1x32xf32>
    %c0_36 = arith.constant 0 : index
    %c0_37 = arith.constant 0 : index
    %c0_38 = arith.constant 0 : index
    %78 = vector.load %arg9[%c0_36, %c0_37, %c0_38] : memref<2x1x32xf32, #tpu.memory_space<vmem>>, vector<1x1x32xf32>
    %79 = vector.shape_cast %78 : vector<1x1x32xf32> to vector<1x32xf32>
    %cst_39 = arith.constant dense<0.000000e+00> : vector<16xf32>
    %80 = vector.multi_reduction <add>, %75, %cst_39 [1] : vector<16x32xf32> to vector<16xf32>
    %81 = vector.shape_cast %80 : vector<16xf32> to vector<16x1xf32>
    %cst_40 = arith.constant 3.200000e+01 : f32
    %82 = vector.broadcast %cst_40 : f32 to vector<16x1xf32>
    %83 = arith.divf %81, %82 : vector<16x1xf32>
    %84 = vector.broadcast %83 : vector<16x1xf32> to vector<16x32xf32>
    %85 = arith.subf %75, %84 : vector<16x32xf32>
    %86 = arith.mulf %85, %85 : vector<16x32xf32>
    %cst_41 = arith.constant dense<0.000000e+00> : vector<16xf32>
    %87 = vector.multi_reduction <add>, %86, %cst_41 [1] : vector<16x32xf32> to vector<16xf32>
    %88 = vector.shape_cast %87 : vector<16xf32> to vector<16x1xf32>
    %cst_42 = arith.constant 3.200000e+01 : f32
    %89 = vector.broadcast %cst_42 : f32 to vector<16x1xf32>
    %90 = arith.divf %88, %89 : vector<16x1xf32>
    %91 = vector.broadcast %83 : vector<16x1xf32> to vector<16x32xf32>
    %92 = arith.subf %75, %91 : vector<16x32xf32>
    %cst_43 = arith.constant 9.99999974E-6 : f32
    %93 = vector.broadcast %cst_43 : f32 to vector<16x1xf32>
    %94 = arith.addf %90, %93 : vector<16x1xf32>
    %95 = math.rsqrt %94 : vector<16x1xf32>
    %96 = vector.broadcast %95 : vector<16x1xf32> to vector<16x32xf32>
    %97 = arith.mulf %92, %96 : vector<16x32xf32>
    %98 = vector.broadcast %77 : vector<1x32xf32> to vector<16x32xf32>
    %99 = arith.mulf %97, %98 : vector<16x32xf32>
    %100 = vector.broadcast %79 : vector<1x32xf32> to vector<16x32xf32>
    %101 = arith.addf %99, %100 : vector<16x32xf32>
    %102 = arith.truncf %101 : vector<16x32xf32> to vector<16x32xbf16>
    %c0_44 = arith.constant 0 : index
    %c0_45 = arith.constant 0 : index
    %c0_46 = arith.constant 0 : index
    %103 = vector.load %arg10[%c0_44, %c0_45, %c0_46] : memref<2x32x128xbf16, #tpu.memory_space<vmem>>, vector<1x32x128xbf16>
    %104 = vector.shape_cast %103 : vector<1x32x128xbf16> to vector<32x128xbf16>
    %cst_47 = arith.constant dense<0.000000e+00> : vector<16x128xf32>
    %105 = tpu.matmul %102, %104, %cst_47 {dimension_numbers = #tpu.dot_dimension_numbers<[1], [0], [0], [1], [0, 0, 1, 1], [], []>} : vector<16x32xbf16>, vector<32x128xbf16>, vector<16x128xf32> -> vector<16x128xf32>
    %c0_48 = arith.constant 0 : index
    %c0_49 = arith.constant 0 : index
    %c0_50 = arith.constant 0 : index
    %106 = vector.load %arg11[%c0_48, %c0_49, %c0_50] : memref<2x1x128xf32, #tpu.memory_space<vmem>>, vector<1x1x128xf32>
    %107 = vector.shape_cast %106 : vector<1x1x128xf32> to vector<1x128xf32>
    %108 = vector.broadcast %107 : vector<1x128xf32> to vector<16x128xf32>
    %109 = arith.addf %105, %108 : vector<16x128xf32>
    %cst_51 = arith.constant 5.000000e-01 : f32
    %110 = vector.broadcast %cst_51 : f32 to vector<16x128xf32>
    %111 = arith.mulf %110, %109 : vector<16x128xf32>
    %cst_52 = arith.constant 4.471500e-02 : f32
    %112 = vector.broadcast %cst_52 : f32 to vector<16x128xf32>
    %113 = arith.mulf %112, %109 : vector<16x128xf32>
    %114 = arith.mulf %113, %109 : vector<16x128xf32>
    %115 = arith.mulf %114, %109 : vector<16x128xf32>
    %116 = arith.addf %109, %115 : vector<16x128xf32>
    %cst_53 = arith.constant 0.797884583 : f32
    %117 = vector.broadcast %cst_53 : f32 to vector<16x128xf32>
    %118 = arith.mulf %117, %116 : vector<16x128xf32>
    %119 = math.tanh %118 : vector<16x128xf32>
    %cst_54 = arith.constant 1.000000e+00 : f32
    %120 = vector.broadcast %cst_54 : f32 to vector<16x128xf32>
    %121 = arith.addf %120, %119 : vector<16x128xf32>
    %122 = arith.mulf %111, %121 : vector<16x128xf32>
    %123 = arith.truncf %122 : vector<16x128xf32> to vector<16x128xbf16>
    %c0_55 = arith.constant 0 : index
    %c0_56 = arith.constant 0 : index
    %c0_57 = arith.constant 0 : index
    %124 = vector.load %arg12[%c0_55, %c0_56, %c0_57] : memref<2x128x32xbf16, #tpu.memory_space<vmem>>, vector<1x128x32xbf16>
    %125 = vector.shape_cast %124 : vector<1x128x32xbf16> to vector<128x32xbf16>
    %cst_58 = arith.constant dense<0.000000e+00> : vector<16x32xf32>
    %126 = tpu.matmul %123, %125, %cst_58 {dimension_numbers = #tpu.dot_dimension_numbers<[1], [0], [0], [1], [0, 0, 1, 1], [], []>} : vector<16x128xbf16>, vector<128x32xbf16>, vector<16x32xf32> -> vector<16x32xf32>
    %c0_59 = arith.constant 0 : index
    %c0_60 = arith.constant 0 : index
    %c0_61 = arith.constant 0 : index
    %127 = vector.load %arg13[%c0_59, %c0_60, %c0_61] : memref<2x1x32xf32, #tpu.memory_space<vmem>>, vector<1x1x32xf32>
    %128 = vector.shape_cast %127 : vector<1x1x32xf32> to vector<1x32xf32>
    %129 = vector.broadcast %128 : vector<1x32xf32> to vector<16x32xf32>
    %130 = arith.addf %126, %129 : vector<16x32xf32>
    %131 = arith.addf %75, %130 : vector<16x32xf32>
    %c1 = arith.constant 1 : index
    %c0_62 = arith.constant 0 : index
    %c0_63 = arith.constant 0 : index
    %132 = vector.load %arg2[%c1, %c0_62, %c0_63] : memref<2x1x32xf32, #tpu.memory_space<vmem>>, vector<1x1x32xf32>
    %133 = vector.shape_cast %132 : vector<1x1x32xf32> to vector<1x32xf32>
    %c1_64 = arith.constant 1 : index
    %c0_65 = arith.constant 0 : index
    %c0_66 = arith.constant 0 : index
    %134 = vector.load %arg3[%c1_64, %c0_65, %c0_66] : memref<2x1x32xf32, #tpu.memory_space<vmem>>, vector<1x1x32xf32>
    %135 = vector.shape_cast %134 : vector<1x1x32xf32> to vector<1x32xf32>
    %cst_67 = arith.constant dense<0.000000e+00> : vector<16xf32>
    %136 = vector.multi_reduction <add>, %131, %cst_67 [1] : vector<16x32xf32> to vector<16xf32>
    %137 = vector.shape_cast %136 : vector<16xf32> to vector<16x1xf32>
    %cst_68 = arith.constant 3.200000e+01 : f32
    %138 = vector.broadcast %cst_68 : f32 to vector<16x1xf32>
    %139 = arith.divf %137, %138 : vector<16x1xf32>
    %140 = vector.broadcast %139 : vector<16x1xf32> to vector<16x32xf32>
    %141 = arith.subf %131, %140 : vector<16x32xf32>
    %142 = arith.mulf %141, %141 : vector<16x32xf32>
    %cst_69 = arith.constant dense<0.000000e+00> : vector<16xf32>
    %143 = vector.multi_reduction <add>, %142, %cst_69 [1] : vector<16x32xf32> to vector<16xf32>
    %144 = vector.shape_cast %143 : vector<16xf32> to vector<16x1xf32>
    %cst_70 = arith.constant 3.200000e+01 : f32
    %145 = vector.broadcast %cst_70 : f32 to vector<16x1xf32>
    %146 = arith.divf %144, %145 : vector<16x1xf32>
    %147 = vector.broadcast %139 : vector<16x1xf32> to vector<16x32xf32>
    %148 = arith.subf %131, %147 : vector<16x32xf32>
    %cst_71 = arith.constant 9.99999974E-6 : f32
    %149 = vector.broadcast %cst_71 : f32 to vector<16x1xf32>
    %150 = arith.addf %146, %149 : vector<16x1xf32>
    %151 = math.rsqrt %150 : vector<16x1xf32>
    %152 = vector.broadcast %151 : vector<16x1xf32> to vector<16x32xf32>
    %153 = arith.mulf %148, %152 : vector<16x32xf32>
    %154 = vector.broadcast %133 : vector<1x32xf32> to vector<16x32xf32>
    %155 = arith.mulf %153, %154 : vector<16x32xf32>
    %156 = vector.broadcast %135 : vector<1x32xf32> to vector<16x32xf32>
    %157 = arith.addf %155, %156 : vector<16x32xf32>
    %158 = arith.truncf %157 : vector<16x32xf32> to vector<16x32xbf16>
    %c1_72 = arith.constant 1 : index
    %c0_73 = arith.constant 0 : index
    %c0_74 = arith.constant 0 : index
    %159 = vector.load %arg4[%c1_72, %c0_73, %c0_74] : memref<2x32x96xbf16, #tpu.memory_space<vmem>>, vector<1x32x96xbf16>
    %160 = vector.shape_cast %159 : vector<1x32x96xbf16> to vector<32x96xbf16>
    %cst_75 = arith.constant dense<0.000000e+00> : vector<16x96xf32>
    %161 = tpu.matmul %158, %160, %cst_75 {dimension_numbers = #tpu.dot_dimension_numbers<[1], [0], [0], [1], [0, 0, 1, 1], [], []>} : vector<16x32xbf16>, vector<32x96xbf16>, vector<16x96xf32> -> vector<16x96xf32>
    %c1_76 = arith.constant 1 : index
    %c0_77 = arith.constant 0 : index
    %c0_78 = arith.constant 0 : index
    %162 = vector.load %arg5[%c1_76, %c0_77, %c0_78] : memref<2x1x96xf32, #tpu.memory_space<vmem>>, vector<1x1x96xf32>
    %163 = vector.shape_cast %162 : vector<1x1x96xf32> to vector<1x96xf32>
    %164 = vector.broadcast %163 : vector<1x96xf32> to vector<16x96xf32>
    %165 = arith.addf %161, %164 : vector<16x96xf32>
    %166 = vector.extract_strided_slice %165 {offsets = [0, 0], sizes = [16, 32], strides = [1, 1]} : vector<16x96xf32> to vector<16x32xf32>
    %167 = vector.shape_cast %166 : vector<16x32xf32> to vector<16x2x16xf32>
    %168 = tpu.transpose %167, [1, 0, 2] : vector<16x2x16xf32> -> vector<2x16x16xf32>
    %169 = vector.extract_strided_slice %165 {offsets = [0, 32], sizes = [16, 32], strides = [1, 1]} : vector<16x96xf32> to vector<16x32xf32>
    %170 = vector.shape_cast %169 : vector<16x32xf32> to vector<16x2x16xf32>
    %171 = tpu.transpose %170, [1, 0, 2] : vector<16x2x16xf32> -> vector<2x16x16xf32>
    %172 = vector.extract_strided_slice %165 {offsets = [0, 64], sizes = [16, 32], strides = [1, 1]} : vector<16x96xf32> to vector<16x32xf32>
    %173 = vector.shape_cast %172 : vector<16x32xf32> to vector<16x2x16xf32>
    %174 = tpu.transpose %173, [1, 0, 2] : vector<16x2x16xf32> -> vector<2x16x16xf32>
    %175 = arith.truncf %168 : vector<2x16x16xf32> to vector<2x16x16xbf16>
    %176 = arith.truncf %171 : vector<2x16x16xf32> to vector<2x16x16xbf16>
    "tpu.trace_start"() <{level = 10 : i32, message = "hqd,hkd->hqk"}> : () -> ()
    %cst_79 = arith.constant dense<0.000000e+00> : vector<2x16x16xf32>
    %177 = tpu.matmul %175, %176, %cst_79 {dimension_numbers = #tpu.dot_dimension_numbers<[2], [2], [1], [1], [0, 0, 0, 1, 1, 1], [0], [0]>} : vector<2x16x16xbf16>, vector<2x16x16xbf16>, vector<2x16x16xf32> -> vector<2x16x16xf32>
    "tpu.trace_stop"() : () -> ()
    %cst_80 = arith.constant 2.500000e-01 : f32
    %178 = vector.broadcast %cst_80 : f32 to vector<2x16x16xf32>
    %179 = arith.mulf %177, %178 : vector<2x16x16xf32>
    %180 = vector.broadcast %1 : vector<1x16x16xf32> to vector<2x16x16xf32>
    %181 = arith.addf %179, %180 : vector<2x16x16xf32>
    %cst_81 = arith.constant dense<0xFF800000> : vector<2x16xf32>
    %182 = vector.multi_reduction <maximumf>, %181, %cst_81 [2] : vector<2x16x16xf32> to vector<2x16xf32>
    %183 = vector.shape_cast %182 : vector<2x16xf32> to vector<2x16x1xf32>
    %184 = vector.broadcast %183 : vector<2x16x1xf32> to vector<2x16x16xf32>
    %185 = arith.subf %181, %184 : vector<2x16x16xf32>
    %186 = math.exp %185 : vector<2x16x16xf32>
    %cst_82 = arith.constant dense<0.000000e+00> : vector<2x16xf32>
    %187 = vector.multi_reduction <add>, %186, %cst_82 [2] : vector<2x16x16xf32> to vector<2x16xf32>
    %188 = vector.shape_cast %187 : vector<2x16xf32> to vector<2x16x1xf32>
    %189 = tpu.reciprocal %188 {approx = true} : vector<2x16x1xf32> -> vector<2x16x1xf32>
    %190 = vector.broadcast %189 : vector<2x16x1xf32> to vector<2x16x16xf32>
    %191 = arith.mulf %186, %190 : vector<2x16x16xf32>
    %192 = arith.truncf %191 : vector<2x16x16xf32> to vector<2x16x16xbf16>
    %193 = arith.truncf %174 : vector<2x16x16xf32> to vector<2x16x16xbf16>
    "tpu.trace_start"() <{level = 10 : i32, message = "hqk,hkd->hqd"}> : () -> ()
    %cst_83 = arith.constant dense<0.000000e+00> : vector<2x16x16xf32>
    %194 = tpu.matmul %192, %193, %cst_83 {dimension_numbers = #tpu.dot_dimension_numbers<[2], [1], [1], [2], [0, 0, 0, 1, 1, 2], [0], [0]>} : vector<2x16x16xbf16>, vector<2x16x16xbf16>, vector<2x16x16xf32> -> vector<2x16x16xf32>
    "tpu.trace_stop"() : () -> ()
    %195 = tpu.transpose %194, [1, 0, 2] : vector<2x16x16xf32> -> vector<16x2x16xf32>
    %196 = vector.shape_cast %195 : vector<16x2x16xf32> to vector<16x32xf32>
    %197 = arith.truncf %196 : vector<16x32xf32> to vector<16x32xbf16>
    %c1_84 = arith.constant 1 : index
    %c0_85 = arith.constant 0 : index
    %c0_86 = arith.constant 0 : index
    %198 = vector.load %arg6[%c1_84, %c0_85, %c0_86] : memref<2x32x32xbf16, #tpu.memory_space<vmem>>, vector<1x32x32xbf16>
    %199 = vector.shape_cast %198 : vector<1x32x32xbf16> to vector<32x32xbf16>
    %cst_87 = arith.constant dense<0.000000e+00> : vector<16x32xf32>
    %200 = tpu.matmul %197, %199, %cst_87 {dimension_numbers = #tpu.dot_dimension_numbers<[1], [0], [0], [1], [0, 0, 1, 1], [], []>} : vector<16x32xbf16>, vector<32x32xbf16>, vector<16x32xf32> -> vector<16x32xf32>
    %c1_88 = arith.constant 1 : index
    %c0_89 = arith.constant 0 : index
    %c0_90 = arith.constant 0 : index
    %201 = vector.load %arg7[%c1_88, %c0_89, %c0_90] : memref<2x1x32xf32, #tpu.memory_space<vmem>>, vector<1x1x32xf32>
    %202 = vector.shape_cast %201 : vector<1x1x32xf32> to vector<1x32xf32>
    %203 = vector.broadcast %202 : vector<1x32xf32> to vector<16x32xf32>
    %204 = arith.addf %200, %203 : vector<16x32xf32>
    %205 = arith.addf %131, %204 : vector<16x32xf32>
    %c1_91 = arith.constant 1 : index
    %c0_92 = arith.constant 0 : index
    %c0_93 = arith.constant 0 : index
    %206 = vector.load %arg8[%c1_91, %c0_92, %c0_93] : memref<2x1x32xf32, #tpu.memory_space<vmem>>, vector<1x1x32xf32>
    %207 = vector.shape_cast %206 : vector<1x1x32xf32> to vector<1x32xf32>
    %c1_94 = arith.constant 1 : index
    %c0_95 = arith.constant 0 : index
    %c0_96 = arith.constant 0 : index
    %208 = vector.load %arg9[%c1_94, %c0_95, %c0_96] : memref<2x1x32xf32, #tpu.memory_space<vmem>>, vector<1x1x32xf32>
    %209 = vector.shape_cast %208 : vector<1x1x32xf32> to vector<1x32xf32>
    %cst_97 = arith.constant dense<0.000000e+00> : vector<16xf32>
    %210 = vector.multi_reduction <add>, %205, %cst_97 [1] : vector<16x32xf32> to vector<16xf32>
    %211 = vector.shape_cast %210 : vector<16xf32> to vector<16x1xf32>
    %cst_98 = arith.constant 3.200000e+01 : f32
    %212 = vector.broadcast %cst_98 : f32 to vector<16x1xf32>
    %213 = arith.divf %211, %212 : vector<16x1xf32>
    %214 = vector.broadcast %213 : vector<16x1xf32> to vector<16x32xf32>
    %215 = arith.subf %205, %214 : vector<16x32xf32>
    %216 = arith.mulf %215, %215 : vector<16x32xf32>
    %cst_99 = arith.constant dense<0.000000e+00> : vector<16xf32>
    %217 = vector.multi_reduction <add>, %216, %cst_99 [1] : vector<16x32xf32> to vector<16xf32>
    %218 = vector.shape_cast %217 : vector<16xf32> to vector<16x1xf32>
    %cst_100 = arith.constant 3.200000e+01 : f32
    %219 = vector.broadcast %cst_100 : f32 to vector<16x1xf32>
    %220 = arith.divf %218, %219 : vector<16x1xf32>
    %221 = vector.broadcast %213 : vector<16x1xf32> to vector<16x32xf32>
    %222 = arith.subf %205, %221 : vector<16x32xf32>
    %cst_101 = arith.constant 9.99999974E-6 : f32
    %223 = vector.broadcast %cst_101 : f32 to vector<16x1xf32>
    %224 = arith.addf %220, %223 : vector<16x1xf32>
    %225 = math.rsqrt %224 : vector<16x1xf32>
    %226 = vector.broadcast %225 : vector<16x1xf32> to vector<16x32xf32>
    %227 = arith.mulf %222, %226 : vector<16x32xf32>
    %228 = vector.broadcast %207 : vector<1x32xf32> to vector<16x32xf32>
    %229 = arith.mulf %227, %228 : vector<16x32xf32>
    %230 = vector.broadcast %209 : vector<1x32xf32> to vector<16x32xf32>
    %231 = arith.addf %229, %230 : vector<16x32xf32>
    %232 = arith.truncf %231 : vector<16x32xf32> to vector<16x32xbf16>
    %c1_102 = arith.constant 1 : index
    %c0_103 = arith.constant 0 : index
    %c0_104 = arith.constant 0 : index
    %233 = vector.load %arg10[%c1_102, %c0_103, %c0_104] : memref<2x32x128xbf16, #tpu.memory_space<vmem>>, vector<1x32x128xbf16>
    %234 = vector.shape_cast %233 : vector<1x32x128xbf16> to vector<32x128xbf16>
    %cst_105 = arith.constant dense<0.000000e+00> : vector<16x128xf32>
    %235 = tpu.matmul %232, %234, %cst_105 {dimension_numbers = #tpu.dot_dimension_numbers<[1], [0], [0], [1], [0, 0, 1, 1], [], []>} : vector<16x32xbf16>, vector<32x128xbf16>, vector<16x128xf32> -> vector<16x128xf32>
    %c1_106 = arith.constant 1 : index
    %c0_107 = arith.constant 0 : index
    %c0_108 = arith.constant 0 : index
    %236 = vector.load %arg11[%c1_106, %c0_107, %c0_108] : memref<2x1x128xf32, #tpu.memory_space<vmem>>, vector<1x1x128xf32>
    %237 = vector.shape_cast %236 : vector<1x1x128xf32> to vector<1x128xf32>
    %238 = vector.broadcast %237 : vector<1x128xf32> to vector<16x128xf32>
    %239 = arith.addf %235, %238 : vector<16x128xf32>
    %cst_109 = arith.constant 5.000000e-01 : f32
    %240 = vector.broadcast %cst_109 : f32 to vector<16x128xf32>
    %241 = arith.mulf %240, %239 : vector<16x128xf32>
    %cst_110 = arith.constant 4.471500e-02 : f32
    %242 = vector.broadcast %cst_110 : f32 to vector<16x128xf32>
    %243 = arith.mulf %242, %239 : vector<16x128xf32>
    %244 = arith.mulf %243, %239 : vector<16x128xf32>
    %245 = arith.mulf %244, %239 : vector<16x128xf32>
    %246 = arith.addf %239, %245 : vector<16x128xf32>
    %cst_111 = arith.constant 0.797884583 : f32
    %247 = vector.broadcast %cst_111 : f32 to vector<16x128xf32>
    %248 = arith.mulf %247, %246 : vector<16x128xf32>
    %249 = math.tanh %248 : vector<16x128xf32>
    %cst_112 = arith.constant 1.000000e+00 : f32
    %250 = vector.broadcast %cst_112 : f32 to vector<16x128xf32>
    %251 = arith.addf %250, %249 : vector<16x128xf32>
    %252 = arith.mulf %241, %251 : vector<16x128xf32>
    %253 = arith.truncf %252 : vector<16x128xf32> to vector<16x128xbf16>
    %c1_113 = arith.constant 1 : index
    %c0_114 = arith.constant 0 : index
    %c0_115 = arith.constant 0 : index
    %254 = vector.load %arg12[%c1_113, %c0_114, %c0_115] : memref<2x128x32xbf16, #tpu.memory_space<vmem>>, vector<1x128x32xbf16>
    %255 = vector.shape_cast %254 : vector<1x128x32xbf16> to vector<128x32xbf16>
    %cst_116 = arith.constant dense<0.000000e+00> : vector<16x32xf32>
    %256 = tpu.matmul %253, %255, %cst_116 {dimension_numbers = #tpu.dot_dimension_numbers<[1], [0], [0], [1], [0, 0, 1, 1], [], []>} : vector<16x128xbf16>, vector<128x32xbf16>, vector<16x32xf32> -> vector<16x32xf32>
    %c1_117 = arith.constant 1 : index
    %c0_118 = arith.constant 0 : index
    %c0_119 = arith.constant 0 : index
    %257 = vector.load %arg13[%c1_117, %c0_118, %c0_119] : memref<2x1x32xf32, #tpu.memory_space<vmem>>, vector<1x1x32xf32>
    %258 = vector.shape_cast %257 : vector<1x1x32xf32> to vector<1x32xf32>
    %259 = vector.broadcast %258 : vector<1x32xf32> to vector<16x32xf32>
    %260 = arith.addf %256, %259 : vector<16x32xf32>
    %261 = arith.addf %205, %260 : vector<16x32xf32>
    %c0_120 = arith.constant 0 : index
    %c0_121 = arith.constant 0 : index
    %262 = vector.load %arg14[%c0_120, %c0_121] : memref<1x32xf32, #tpu.memory_space<vmem>>, vector<1x32xf32>
    %c0_122 = arith.constant 0 : index
    %c0_123 = arith.constant 0 : index
    %263 = vector.load %arg15[%c0_122, %c0_123] : memref<1x32xf32, #tpu.memory_space<vmem>>, vector<1x32xf32>
    %cst_124 = arith.constant dense<0.000000e+00> : vector<16xf32>
    %264 = vector.multi_reduction <add>, %261, %cst_124 [1] : vector<16x32xf32> to vector<16xf32>
    %265 = vector.shape_cast %264 : vector<16xf32> to vector<16x1xf32>
    %cst_125 = arith.constant 3.200000e+01 : f32
    %266 = vector.broadcast %cst_125 : f32 to vector<16x1xf32>
    %267 = arith.divf %265, %266 : vector<16x1xf32>
    %268 = vector.broadcast %267 : vector<16x1xf32> to vector<16x32xf32>
    %269 = arith.subf %261, %268 : vector<16x32xf32>
    %270 = arith.mulf %269, %269 : vector<16x32xf32>
    %cst_126 = arith.constant dense<0.000000e+00> : vector<16xf32>
    %271 = vector.multi_reduction <add>, %270, %cst_126 [1] : vector<16x32xf32> to vector<16xf32>
    %272 = vector.shape_cast %271 : vector<16xf32> to vector<16x1xf32>
    %cst_127 = arith.constant 3.200000e+01 : f32
    %273 = vector.broadcast %cst_127 : f32 to vector<16x1xf32>
    %274 = arith.divf %272, %273 : vector<16x1xf32>
    %275 = vector.broadcast %267 : vector<16x1xf32> to vector<16x32xf32>
    %276 = arith.subf %261, %275 : vector<16x32xf32>
    %cst_128 = arith.constant 9.99999974E-6 : f32
    %277 = vector.broadcast %cst_128 : f32 to vector<16x1xf32>
    %278 = arith.addf %274, %277 : vector<16x1xf32>
    %279 = math.rsqrt %278 : vector<16x1xf32>
    %280 = vector.broadcast %279 : vector<16x1xf32> to vector<16x32xf32>
    %281 = arith.mulf %276, %280 : vector<16x32xf32>
    %282 = vector.broadcast %262 : vector<1x32xf32> to vector<16x32xf32>
    %283 = arith.mulf %281, %282 : vector<16x32xf32>
    %284 = vector.broadcast %263 : vector<1x32xf32> to vector<16x32xf32>
    %285 = arith.addf %283, %284 : vector<16x32xf32>
    %286 = arith.truncf %285 : vector<16x32xf32> to vector<16x32xbf16>
    %c0_129 = arith.constant 0 : index
    %c0_130 = arith.constant 0 : index
    %287 = vector.load %arg16[%c0_129, %c0_130] : memref<32x128xbf16, #tpu.memory_space<vmem>>, vector<32x128xbf16>
    %cst_131 = arith.constant dense<0.000000e+00> : vector<16x128xf32>
    %288 = tpu.matmul %286, %287, %cst_131 {dimension_numbers = #tpu.dot_dimension_numbers<[1], [0], [0], [1], [0, 0, 1, 1], [], []>} : vector<16x32xbf16>, vector<32x128xbf16>, vector<16x128xf32> -> vector<16x128xf32>
    %c0_132 = arith.constant 0 : index
    %c0_133 = arith.constant 0 : index
    %289 = vector.load %arg17[%c0_132, %c0_133] : memref<16x128xf32, #tpu.memory_space<vmem>>, vector<16x128xf32>
    tpu.vector_store %arg17[%c0_132, %c0_133], %288 {strides = array<i32>} : memref<16x128xf32, #tpu.memory_space<vmem>>, vector<16x128xf32>,
    return
  }
}

</mosaic_0001>

<llo_original>
// kernel: gpt2_forward.1
$region0: #{gpt2_forward.1}
  #allocation0 [shape = 'u32[]', space=smem, size = 0x4, offset = 0x4, fixed_abs, tag = 'smem constant byte address 0x4 - core index']
  #allocation1 [shape = 'u32[72,128]{1,0:T(1,128)}', space=vmem, size = 0x9000, scoped, tag = 'internal scratch']
  %s0 = inlined_call_operand.vmem [shape: f32[16,32], index: 0, kind: input, shape index: {}]
  %s1 = inlined_call_operand.vmem [shape: f32[1,16,16], index: 1, kind: input, shape index: {}]
  %s2 = inlined_call_operand.vmem [shape: f32[2,1,32], index: 2, kind: input, shape index: {}]
  %s3 = inlined_call_operand.vmem [shape: f32[2,1,32], index: 3, kind: input, shape index: {}]
  %s4 = inlined_call_operand.vmem [shape: bf16[2,32,96], index: 4, kind: input, shape index: {}]
  %s5 = inlined_call_operand.vmem [shape: f32[2,1,96], index: 5, kind: input, shape index: {}]
  %s6 = inlined_call_operand.vmem [shape: bf16[2,32,32], index: 6, kind: input, shape index: {}]
  %s7 = inlined_call_operand.vmem [shape: f32[2,1,32], index: 7, kind: input, shape index: {}]
  %s8 = inlined_call_operand.vmem [shape: f32[2,1,32], index: 8, kind: input, shape index: {}]
  %s9 = inlined_call_operand.vmem [shape: f32[2,1,32], index: 9, kind: input, shape index: {}]
  %s10 = inlined_call_operand.vmem [shape: bf16[2,32,128], index: 10, kind: input, shape index: {}]
  %s11 = inlined_call_operand.vmem [shape: f32[2,1,128], index: 11, kind: input, shape index: {}]
  %s12 = inlined_call_operand.vmem [shape: bf16[2,128,32], index: 12, kind: input, shape index: {}]
  %s13 = inlined_call_operand.vmem [shape: f32[2,1,32], index: 13, kind: input, shape index: {}]
  %s14 = inlined_call_operand.vmem [shape: f32[1,32], index: 14, kind: input, shape index: {}]
  %s15 = inlined_call_operand.vmem [shape: f32[1,32], index: 15, kind: input, shape index: {}]
  %s16 = inlined_call_operand.vmem [shape: bf16[32,128], index: 16, kind: input, shape index: {}]
  %s17 = inlined_call_operand.vmem [shape: f32[16,128], index: 17, kind: output, shape index: {}]
  %s18 = sld [smem:[#allocation0]]
  $region78: #{gpt2_forward.1} parent=0
    _
  %s20 = ssub.s32 1, %s18
  %s21 = scalar_select 0, %s20, %s18
  // Predicated region
  $region2: #{gpt2_forward.1} parent=0 // pred_check
    _
  $region3: #{gpt2_forward.1} parent=0 // pred_check_branch
    %23 = sbr.rel (0) target = $region5
  $region4: #{gpt2_forward.1} parent=0 // pred_region
    _
  $region5: #{gpt2_forward.1} parent=0 // pred_fallthru
    _
  // Predicated region
  $region6: #{gpt2_forward.1} parent=0 // pred_check
    _
  $region7: #{gpt2_forward.1} parent=0 // pred_check_branch
    %25 = sbr.rel (0) target = $region9
  $region8: #{gpt2_forward.1} parent=0 // pred_region
    _
  $region9: #{gpt2_forward.1} parent=0 // pred_fallthru
    _
  // Predicated region
  $region10: #{gpt2_forward.1} parent=0 // pred_check
    _
  $region11: #{gpt2_forward.1} parent=0 // pred_check_branch
    %27 = sbr.rel (0) target = $region13
  $region12: #{gpt2_forward.1} parent=0 // pred_region
    _
  $region13: #{gpt2_forward.1} parent=0 // pred_fallthru
    _
  // Predicated region
  $region14: #{gpt2_forward.1} parent=0 // pred_check
    _
  $region15: #{gpt2_forward.1} parent=0 // pred_check_branch
    %29 = sbr.rel (0) target = $region17
  $region16: #{gpt2_forward.1} parent=0 // pred_region
    _
  $region17: #{gpt2_forward.1} parent=0 // pred_fallthru
    _
  // Predicated region
  $region18: #{gpt2_forward.1} parent=0 // pred_check
    _
  $region19: #{gpt2_forward.1} parent=0 // pred_check_branch
    %31 = sbr.rel (0) target = $region21
  $region20: #{gpt2_forward.1} parent=0 // pred_region
    _
  $region21: #{gpt2_forward.1} parent=0 // pred_fallthru
    _
  // Predicated region
  $region22: #{gpt2_forward.1} parent=0 // pred_check
    _
  $region23: #{gpt2_forward.1} parent=0 // pred_check_branch
    %33 = sbr.rel (0) target = $region25
  $region24: #{gpt2_forward.1} parent=0 // pred_region
    _
  $region25: #{gpt2_forward.1} parent=0 // pred_fallthru
    _
  // Predicated region
  $region26: #{gpt2_forward.1} parent=0 // pred_check
    _
  $region27: #{gpt2_forward.1} parent=0 // pred_check_branch
    %35 = sbr.rel (0) target = $region29
  $region28: #{gpt2_forward.1} parent=0 // pred_region
    _
  $region29: #{gpt2_forward.1} parent=0 // pred_fallthru
    _
  // Predicated region
  $region30: #{gpt2_forward.1} parent=0 // pred_check
    _
  $region31: #{gpt2_forward.1} parent=0 // pred_check_branch
    %37 = sbr.rel (0) target = $region33
  $region32: #{gpt2_forward.1} parent=0 // pred_region
    _
  $region33: #{gpt2_forward.1} parent=0 // pred_fallthru
    _
  // Predicated region
  $region34: #{gpt2_forward.1} parent=0 // pred_check
    _
  $region35: #{gpt2_forward.1} parent=0 // pred_check_branch
    %39 = sbr.rel (0) target = $region37
  $region36: #{gpt2_forward.1} parent=0 // pred_region
    _
  $region37: #{gpt2_forward.1} parent=0 // pred_fallthru
    _
  // Predicated region
  $region38: #{gpt2_forward.1} parent=0 // pred_check
    _
  $region39: #{gpt2_forward.1} parent=0 // pred_check_branch
    %41 = sbr.rel (0) target = $region41
  $region40: #{gpt2_forward.1} parent=0 // pred_region
    _
  $region41: #{gpt2_forward.1} parent=0 // pred_fallthru
    _
  // Predicated region
  $region42: #{gpt2_forward.1} parent=0 // pred_check
    _
  $region43: #{gpt2_forward.1} parent=0 // pred_check_branch
    %43 = sbr.rel (0) target = $region45
  $region44: #{gpt2_forward.1} parent=0 // pred_region
    _
  $region45: #{gpt2_forward.1} parent=0 // pred_fallthru
    _
  // Predicated region
  $region46: #{gpt2_forward.1} parent=0 // pred_check
    _
  $region47: #{gpt2_forward.1} parent=0 // pred_check_branch
    %45 = sbr.rel (0) target = $region49
  $region48: #{gpt2_forward.1} parent=0 // pred_region
    _
  $region49: #{gpt2_forward.1} parent=0 // pred_fallthru
    _
  // Predicated region
  $region50: #{gpt2_forward.1} parent=0 // pred_check
    _
  $region51: #{gpt2_forward.1} parent=0 // pred_check_branch
    %47 = sbr.rel (0) target = $region53
  $region52: #{gpt2_forward.1} parent=0 // pred_region
    _
  $region53: #{gpt2_forward.1} parent=0 // pred_fallthru
    _
  // Predicated region
  $region54: #{gpt2_forward.1} parent=0 // pred_check
    _
  $region55: #{gpt2_forward.1} parent=0 // pred_check_branch
    %49 = sbr.rel (0) target = $region57
  $region56: #{gpt2_forward.1} parent=0 // pred_region
    _
  $region57: #{gpt2_forward.1} parent=0 // pred_fallthru
    _
  // Predicated region
  $region58: #{gpt2_forward.1} parent=0 // pred_check
    _
  $region59: #{gpt2_forward.1} parent=0 // pred_check_branch
    %51 = sbr.rel (0) target = $region61
  $region60: #{gpt2_forward.1} parent=0 // pred_region
    _
  $region61: #{gpt2_forward.1} parent=0 // pred_fallthru
    _
  // Predicated region
  $region62: #{gpt2_forward.1} parent=0 // pred_check
    _
  $region63: #{gpt2_forward.1} parent=0 // pred_check_branch
    %53 = sbr.rel (0) target = $region65
  $region64: #{gpt2_forward.1} parent=0 // pred_region
    _
  $region65: #{gpt2_forward.1} parent=0 // pred_fallthru
    _
  // Predicated region
  $region66: #{gpt2_forward.1} parent=0 // pred_check
    _
  $region67: #{gpt2_forward.1} parent=0 // pred_check_branch
    %55 = sbr.rel (0) target = $region69
  $region68: #{gpt2_forward.1} parent=0 // pred_region
    _
  $region69: #{gpt2_forward.1} parent=0 // pred_fallthru
    _
  %v57 = vld [vmem:[%s0] sm:$0xff]
  %v58 = vld [vmem:[%s0 + $0x8] sm:$0xff]
  %v59 = vld [vmem:[%s1] sm:$0xff]
  %v60 = vld [vmem:[%s1 + $0x8] sm:$0xff]
  %v61 = vld [vmem:[%s2] sm:$0x1]
  %v62 = vld [vmem:[%s3] sm:$0x1]
  %vm63 = vcmask 261120
  %v64 = vsel %vm63, %v57, 0.0
  %65 = vadd.xlane.f32.xlu0 %v64
  %v66 = vpop.xlane.xlu0 %65
  %v67 = vsel %vm63, %v58, 0.0
  %68 = vadd.xlane.f32.xlu0 %v67
  %v69 = vpop.xlane.xlu0 %68
  %v70 = vrcp.pop 32.0
  %v71 = vmul.f32 32.0, %v70
  %v72 = vsub.f32 1.0, %v71
  %v73 = vmul.f32 %v70, %v72
  %v74 = vadd.f32 %v70, %v73
  %vm75 = vweird.f32 %v70
  %v76 = vsel %vm75, %v70, %v74
  %v77 = vmul.f32 %v66, %v76
  %v78 = vmul.f32 %v69, %v76
  %v79 = vsub.f32 %v57, %v77
  %v80 = vsub.f32 %v58, %v78
  %v81 = vmul.f32 %v79, %v79
  %v82 = vmul.f32 %v80, %v80
  %v83 = vsel %vm63, %v81, 0.0
  %84 = vadd.xlane.f32.xlu0 %v83
  %v85 = vpop.xlane.xlu0 %84
  %v86 = vsel %vm63, %v82, 0.0
  %87 = vadd.xlane.f32.xlu0 %v86
  %v88 = vpop.xlane.xlu0 %87
  %v89 = vmul.f32 %v85, %v76
  %v90 = vmul.f32 %v88, %v76
  %v91 = vadd.f32 %v89, 1e-05
  %v92 = vadd.f32 %v90, 1e-05
  %v93 = vrsqrt.pop %v91
  %v94 = vmul.f32 %v93, %v91
  %v95 = vmul.f32 %v94, %v93
  %v96 = vmul.f32 0.5, %v95
  %v97 = vsub.f32 1.5, %v96
  %v98 = vmul.f32 %v93, %v97
  %vm99 = vweird.f32 %v91
  %vm100 = vweird.f32 %v93
  %vm101 = vmor %vm99, %vm100
  %v102 = vsel %vm101, %v93, %v98
  %v103 = vrsqrt.pop %v92
  %v104 = vmul.f32 %v103, %v92
  %v105 = vmul.f32 %v104, %v103
  %v106 = vmul.f32 0.5, %v105
  %v107 = vsub.f32 1.5, %v106
  %v108 = vmul.f32 %v103, %v107
  %vm109 = vweird.f32 %v92
  %vm110 = vweird.f32 %v103
  %vm111 = vmor %vm109, %vm110
  %v112 = vsel %vm111, %v103, %v108
  %v113 = vmul.f32 %v79, %v102
  %v114 = vmul.f32 %v80, %v112
  %v116 = vperm.slane %v61, 0
  %v118 = vmul.f32 %v113, %v116
  %v119 = vmul.f32 %v114, %v116
  %v121 = vperm.slane %v62, 0
  %v123 = vadd.f32 %v118, %v121
  %v124 = vadd.f32 %v119, %v121
  %v125 = vpack.c.bf16 %v124, %v123
  %v126 = vld [vmem:[%s4] sm:$0xf]
  %v127 = vld [vmem:[%s4 + $0x4] sm:$0xf]
  %v128 = vld [vmem:[%s4 + $0x8] sm:$0xf]
  %v129 = vld [vmem:[%s4 + $0xc] sm:$0xf]
  %v130 = vld [vmem:[%s5] sm:$0x1]
  %v132 = vperm.slane %v130, 0
  %v138 = vunpack.c.l.b16 %v126
  %v139 = vunpack.c.l.b16 %v127
  %v140 = vunpack.c.l.b16 %v128
  %v141 = vunpack.c.l.b16 %v129
  %v142 = vpack.c.b16 %v139, %v138
  %v143 = vpack.c.b16 %v141, %v140
  %v147 = vsel %vm63, %v125, 0
  %149 = vmatpush.bf16.msra.mxu0 0
  %150 = vmatpush.bf16.msra.mxu0 0
  %151 = vmatpush.bf16.msra.mxu0 0
  %152 = vmatpush.bf16.msra.mxu0 0
  %153 = vmatpush.bf16.msra.mxu0 0
  %154 = vmatpush.bf16.msra.mxu0 0
  %155 = vmatpush.bf16.msra.mxu0 %v143
  %156 = vmatpush.bf16.msra.mxu0 %v142
  %157 = vmatmul.bf16.gmra.mxu0 %v147
  %v158 = vpop.f32.mrf.mxu0
  %v159 = vadd.f32 %v132, %v158
  %v160 = vpop.f32.mrf.mxu0
  %v161 = vadd.f32 %v132, %v160
  %162 = vdwg.mxu0
  %165 = vrot.lane.b32.xlu0 %v159, 112
  %v166 = vpop.permute.xlu0 %165
  %167 = vrot.lane.b32.xlu0 %v161, 112
  %v168 = vpop.permute.xlu0 %167
  %v171 = vrot.slane %v159, 4
  %vm172 = vcmask 1047556
  %v173 = vsel %vm172, 0.0, %v171
  %v175 = vunpack.c.l.s4 1983009808
  %v176 = vunpack.c.0.s8 %v175
  %v177 = vperm.slane %v159, %v176
  %v179 = vunpack.c.l.s4 1983009808
  %v180 = vunpack.c.0.s8 %v179
  %v181 = vperm.slane %v173, %v180
  %v182 = vrot.slane %v166, 4
  %v183 = vsel %vm172, 0.0, %v182
  %v185 = vunpack.c.l.s4 1983009808
  %v186 = vunpack.c.0.s8 %v185
  %v187 = vperm.slane %v166, %v186
  %v189 = vunpack.c.l.s4 1983009808
  %v190 = vunpack.c.0.s8 %v189
  %v191 = vperm.slane %v183, %v190
  %v192 = vrot.slane %v187, 4
  %v193 = vsel %vm172, %v192, %v177
  %v194 = vrot.slane %v177, 4
  %v195 = vsel %vm172, %v187, %v194
  %v197 = vunpack.c.l.s4 1934713408
  %v198 = vunpack.c.0.s8 %v197
  %v199 = vperm.slane %v193, %v198
  %v201 = vunpack.c.l.s4 1934713408
  %v202 = vunpack.c.0.s8 %v201
  %v203 = vperm.slane %v195, %v202
  %v204 = vrot.slane %v191, 4
  %v205 = vsel %vm172, %v204, %v181
  %v206 = vrot.slane %v181, 4
  %v207 = vsel %vm172, %v191, %v206
  %v209 = vunpack.c.l.s4 1934713408
  %v210 = vunpack.c.0.s8 %v209
  %v211 = vperm.slane %v205, %v210
  %v213 = vunpack.c.l.s4 1934713408
  %v214 = vunpack.c.0.s8 %v213
  %v215 = vperm.slane %v207, %v214
  %v216 = vrot.slane %v199, 4
  %v217 = vsel %vm172, 0.0, %v216
  %v218 = vrot.slane %v203, 4
  %v219 = vsel %vm172, 0.0, %v218
  %v220 = vrot.slane %v211, 4
  %v221 = vsel %vm172, 0.0, %v220
  %v222 = vrot.slane %v215, 4
  %v223 = vsel %vm172, 0.0, %v222
  %v224 = vrot.slane %v161, 4
  %v225 = vsel %vm172, 0.0, %v224
  %v227 = vunpack.c.l.s4 1983009808
  %v228 = vunpack.c.0.s8 %v227
  %v229 = vperm.slane %v161, %v228
  %v231 = vunpack.c.l.s4 1983009808
  %v232 = vunpack.c.0.s8 %v231
  %v233 = vperm.slane %v225, %v232
  %v234 = vrot.slane %v168, 4
  %v235 = vsel %vm172, 0.0, %v234
  %v237 = vunpack.c.l.s4 1983009808
  %v238 = vunpack.c.0.s8 %v237
  %v239 = vperm.slane %v168, %v238
  %v241 = vunpack.c.l.s4 1983009808
  %v242 = vunpack.c.0.s8 %v241
  %v243 = vperm.slane %v235, %v242
  %v244 = vrot.slane %v239, 4
  %v245 = vsel %vm172, %v244, %v229
  %v246 = vrot.slane %v229, 4
  %v247 = vsel %vm172, %v239, %v246
  %v249 = vunpack.c.l.s4 1934713408
  %v250 = vunpack.c.0.s8 %v249
  %v251 = vperm.slane %v245, %v250
  %v253 = vunpack.c.l.s4 1934713408
  %v254 = vunpack.c.0.s8 %v253
  %v255 = vperm.slane %v247, %v254
  %v256 = vrot.slane %v243, 4
  %v257 = vsel %vm172, %v256, %v233
  %v258 = vrot.slane %v233, 4
  %v259 = vsel %vm172, %v243, %v258
  %v261 = vunpack.c.l.s4 1934713408
  %v262 = vunpack.c.0.s8 %v261
  %v263 = vperm.slane %v257, %v262
  %v265 = vunpack.c.l.s4 1934713408
  %v266 = vunpack.c.0.s8 %v265
  %v267 = vperm.slane %v259, %v266
  %v268 = vrot.slane %v251, 4
  %v269 = vsel %vm172, 0.0, %v268
  %v270 = vrot.slane %v255, 4
  %v271 = vsel %vm172, 0.0, %v270
  %v272 = vrot.slane %v263, 4
  %v273 = vsel %vm172, 0.0, %v272
  %v274 = vrot.slane %v267, 4
  %v275 = vsel %vm172, 0.0, %v274
  %v276 = vsel %vm172, %v218, %v199
  %v278 = vunpack.c.l.s4 1983009808
  %v279 = vunpack.c.0.s8 %v278
  %v280 = vperm.slane %v276, %v279
  %v281 = vrot.slane %v219, 4
  %v282 = vsel %vm172, %v281, %v217
  %v284 = vunpack.c.l.s4 1983009808
  %v285 = vunpack.c.0.s8 %v284
  %v286 = vperm.slane %v282, %v285
  %v287 = vsel %vm172, %v222, %v211
  %v289 = vunpack.c.l.s4 1983009808
  %v290 = vunpack.c.0.s8 %v289
  %v291 = vperm.slane %v287, %v290
  %v292 = vrot.slane %v223, 4
  %v293 = vsel %vm172, %v292, %v221
  %v295 = vunpack.c.l.s4 1983009808
  %v296 = vunpack.c.0.s8 %v295
  %v297 = vperm.slane %v293, %v296
  %v298 = vrot.slane %v286, 4
  %v299 = vsel %vm172, %v298, %v280
  %v301 = vunpack.c.l.s4 1934713408
  %v302 = vunpack.c.0.s8 %v301
  %v303 = vperm.slane %v299, %v302
  %v304 = vrot.slane %v297, 4
  %v305 = vsel %vm172, %v304, %v291
  %v307 = vunpack.c.l.s4 1934713408
  %v308 = vunpack.c.0.s8 %v307
  %v309 = vperm.slane %v305, %v308
  %v310 = vrot.slane %v309, 4
  %v311 = vsel %vm172, %v310, %v303
  %v312 = vrot.slane %v303, 4
  %v313 = vsel %vm172, %v309, %v312
  %v314 = vsel %vm172, %v270, %v251
  %v316 = vunpack.c.l.s4 1983009808
  %v317 = vunpack.c.0.s8 %v316
  %v318 = vperm.slane %v314, %v317
  %v319 = vrot.slane %v271, 4
  %v320 = vsel %vm172, %v319, %v269
  %v322 = vunpack.c.l.s4 1983009808
  %v323 = vunpack.c.0.s8 %v322
  %v324 = vperm.slane %v320, %v323
  %v325 = vsel %vm172, %v274, %v263
  %v327 = vunpack.c.l.s4 1983009808
  %v328 = vunpack.c.0.s8 %v327
  %v329 = vperm.slane %v325, %v328
  %v330 = vrot.slane %v275, 4
  %v331 = vsel %vm172, %v330, %v273
  %v333 = vunpack.c.l.s4 1983009808
  %v334 = vunpack.c.0.s8 %v333
  %v335 = vperm.slane %v331, %v334
  %v336 = vrot.slane %v324, 4
  %v337 = vsel %vm172, %v336, %v318
  %v339 = vunpack.c.l.s4 1934713408
  %v340 = vunpack.c.0.s8 %v339
  %v341 = vperm.slane %v337, %v340
  %v342 = vrot.slane %v335, 4
  %v343 = vsel %vm172, %v342, %v329
  %v345 = vunpack.c.l.s4 1934713408
  %v346 = vunpack.c.0.s8 %v345
  %v347 = vperm.slane %v343, %v346
  %v348 = vrot.slane %v347, 4
  %v349 = vsel %vm172, %v348, %v341
  %v350 = vrot.slane %v341, 4
  %v351 = vsel %vm172, %v347, %v350
  %352 = vrot.lane.b32.xlu0 %v159, 96
  %v353 = vpop.permute.xlu0 %352
  %354 = vrot.lane.b32.xlu0 %v161, 96
  %v355 = vpop.permute.xlu0 %354
  %356 = vrot.lane.b32.xlu0 %v166, 96
  %v357 = vpop.permute.xlu0 %356
  %358 = vrot.lane.b32.xlu0 %v168, 96
  %v359 = vpop.permute.xlu0 %358
  %v364 = vrot.slane %v353, 4
  %v365 = vsel %vm172, 0.0, %v364
  %v367 = vunpack.c.l.s4 1983009808
  %v368 = vunpack.c.0.s8 %v367
  %v369 = vperm.slane %v353, %v368
  %v371 = vunpack.c.l.s4 1983009808
  %v372 = vunpack.c.0.s8 %v371
  %v373 = vperm.slane %v365, %v372
  %v374 = vrot.slane %v357, 4
  %v375 = vsel %vm172, 0.0, %v374
  %v377 = vunpack.c.l.s4 1983009808
  %v378 = vunpack.c.0.s8 %v377
  %v379 = vperm.slane %v357, %v378
  %v381 = vunpack.c.l.s4 1983009808
  %v382 = vunpack.c.0.s8 %v381
  %v383 = vperm.slane %v375, %v382
  %v384 = vrot.slane %v379, 4
  %v385 = vsel %vm172, %v384, %v369
  %v386 = vrot.slane %v369, 4
  %v387 = vsel %vm172, %v379, %v386
  %v389 = vunpack.c.l.s4 1934713408
  %v390 = vunpack.c.0.s8 %v389
  %v391 = vperm.slane %v385, %v390
  %v393 = vunpack.c.l.s4 1934713408
  %v394 = vunpack.c.0.s8 %v393
  %v395 = vperm.slane %v387, %v394
  %v396 = vrot.slane %v383, 4
  %v397 = vsel %vm172, %v396, %v373
  %v398 = vrot.slane %v373, 4
  %v399 = vsel %vm172, %v383, %v398
  %v401 = vunpack.c.l.s4 1934713408
  %v402 = vunpack.c.0.s8 %v401
  %v403 = vperm.slane %v397, %v402
  %v405 = vunpack.c.l.s4 1934713408
  %v406 = vunpack.c.0.s8 %v405
  %v407 = vperm.slane %v399, %v406
  %v408 = vrot.slane %v391, 4
  %v409 = vsel %vm172, 0.0, %v408
  %v410 = vrot.slane %v395, 4
  %v411 = vsel %vm172, 0.0, %v410
  %v412 = vrot.slane %v403, 4
  %v413 = vsel %vm172, 0.0, %v412
  %v414 = vrot.slane %v407, 4
  %v415 = vsel %vm172, 0.0, %v414
  %v416 = vrot.slane %v355, 4
  %v417 = vsel %vm172, 0.0, %v416
  %v419 = vunpack.c.l.s4 1983009808
  %v420 = vunpack.c.0.s8 %v419
  %v421 = vperm.slane %v355, %v420
  %v423 = vunpack.c.l.s4 1983009808
  %v424 = vunpack.c.0.s8 %v423
  %v425 = vperm.slane %v417, %v424
  %v426 = vrot.slane %v359, 4
  %v427 = vsel %vm172, 0.0, %v426
  %v429 = vunpack.c.l.s4 1983009808
  %v430 = vunpack.c.0.s8 %v429
  %v431 = vperm.slane %v359, %v430
  %v433 = vunpack.c.l.s4 1983009808
  %v434 = vunpack.c.0.s8 %v433
  %v435 = vperm.slane %v427, %v434
  %v436 = vrot.slane %v431, 4
  %v437 = vsel %vm172, %v436, %v421
  %v438 = vrot.slane %v421, 4
  %v439 = vsel %vm172, %v431, %v438
  %v441 = vunpack.c.l.s4 1934713408
  %v442 = vunpack.c.0.s8 %v441
  %v443 = vperm.slane %v437, %v442
  %v445 = vunpack.c.l.s4 1934713408
  %v446 = vunpack.c.0.s8 %v445
  %v447 = vperm.slane %v439, %v446
  %v448 = vrot.slane %v435, 4
  %v449 = vsel %vm172, %v448, %v425
  %v450 = vrot.slane %v425, 4
  %v451 = vsel %vm172, %v435, %v450
  %v453 = vunpack.c.l.s4 1934713408
  %v454 = vunpack.c.0.s8 %v453
  %v455 = vperm.slane %v449, %v454
  %v457 = vunpack.c.l.s4 1934713408
  %v458 = vunpack.c.0.s8 %v457
  %v459 = vperm.slane %v451, %v458
  %v460 = vrot.slane %v443, 4
  %v461 = vsel %vm172, 0.0, %v460
  %v462 = vrot.slane %v447, 4
  %v463 = vsel %vm172, 0.0, %v462
  %v464 = vrot.slane %v455, 4
  %v465 = vsel %vm172, 0.0, %v464
  %v466 = vrot.slane %v459, 4
  %v467 = vsel %vm172, 0.0, %v466
  %v468 = vsel %vm172, %v410, %v391
  %v470 = vunpack.c.l.s4 1983009808
  %v471 = vunpack.c.0.s8 %v470
  %v472 = vperm.slane %v468, %v471
  %v473 = vrot.slane %v411, 4
  %v474 = vsel %vm172, %v473, %v409
  %v476 = vunpack.c.l.s4 1983009808
  %v477 = vunpack.c.0.s8 %v476
  %v478 = vperm.slane %v474, %v477
  %v479 = vsel %vm172, %v414, %v403
  %v481 = vunpack.c.l.s4 1983009808
  %v482 = vunpack.c.0.s8 %v481
  %v483 = vperm.slane %v479, %v482
  %v484 = vrot.slane %v415, 4
  %v485 = vsel %vm172, %v484, %v413
  %v487 = vunpack.c.l.s4 1983009808
  %v488 = vunpack.c.0.s8 %v487
  %v489 = vperm.slane %v485, %v488
  %v490 = vrot.slane %v478, 4
  %v491 = vsel %vm172, %v490, %v472
  %v493 = vunpack.c.l.s4 1934713408
  %v494 = vunpack.c.0.s8 %v493
  %v495 = vperm.slane %v491, %v494
  %v496 = vrot.slane %v489, 4
  %v497 = vsel %vm172, %v496, %v483
  %v499 = vunpack.c.l.s4 1934713408
  %v500 = vunpack.c.0.s8 %v499
  %v501 = vperm.slane %v497, %v500
  %v502 = vrot.slane %v501, 4
  %v503 = vsel %vm172, %v502, %v495
  %v504 = vrot.slane %v495, 4
  %v505 = vsel %vm172, %v501, %v504
  %v506 = vsel %vm172, %v462, %v443
  %v508 = vunpack.c.l.s4 1983009808
  %v509 = vunpack.c.0.s8 %v508
  %v510 = vperm.slane %v506, %v509
  %v511 = vrot.slane %v463, 4
  %v512 = vsel %vm172, %v511, %v461
  %v514 = vunpack.c.l.s4 1983009808
  %v515 = vunpack.c.0.s8 %v514
  %v516 = vperm.slane %v512, %v515
  %v517 = vsel %vm172, %v466, %v455
  %v519 = vunpack.c.l.s4 1983009808
  %v520 = vunpack.c.0.s8 %v519
  %v521 = vperm.slane %v517, %v520
  %v522 = vrot.slane %v467, 4
  %v523 = vsel %vm172, %v522, %v465
  %v525 = vunpack.c.l.s4 1983009808
  %v526 = vunpack.c.0.s8 %v525
  %v527 = vperm.slane %v523, %v526
  %v528 = vrot.slane %v516, 4
  %v529 = vsel %vm172, %v528, %v510
  %v531 = vunpack.c.l.s4 1934713408
  %v532 = vunpack.c.0.s8 %v531
  %v533 = vperm.slane %v529, %v532
  %v534 = vrot.slane %v527, 4
  %v535 = vsel %vm172, %v534, %v521
  %v537 = vunpack.c.l.s4 1934713408
  %v538 = vunpack.c.0.s8 %v537
  %v539 = vperm.slane %v535, %v538
  %v540 = vrot.slane %v539, 4
  %v541 = vsel %vm172, %v540, %v533
  %v542 = vrot.slane %v533, 4
  %v543 = vsel %vm172, %v539, %v542
  %544 = vrot.lane.b32.xlu0 %v159, 64
  %v545 = vpop.permute.xlu0 %544
  %546 = vrot.lane.b32.xlu0 %v161, 64
  %v547 = vpop.permute.xlu0 %546
  %548 = vrot.lane.b32.xlu0 %v166, 64
  %v549 = vpop.permute.xlu0 %548
  %550 = vrot.lane.b32.xlu0 %v168, 64
  %v551 = vpop.permute.xlu0 %550
  %v556 = vrot.slane %v545, 4
  %v557 = vsel %vm172, 0.0, %v556
  %v559 = vunpack.c.l.s4 1983009808
  %v560 = vunpack.c.0.s8 %v559
  %v561 = vperm.slane %v545, %v560
  %v563 = vunpack.c.l.s4 1983009808
  %v564 = vunpack.c.0.s8 %v563
  %v565 = vperm.slane %v557, %v564
  %v566 = vrot.slane %v549, 4
  %v567 = vsel %vm172, 0.0, %v566
  %v569 = vunpack.c.l.s4 1983009808
  %v570 = vunpack.c.0.s8 %v569
  %v571 = vperm.slane %v549, %v570
  %v573 = vunpack.c.l.s4 1983009808
  %v574 = vunpack.c.0.s8 %v573
  %v575 = vperm.slane %v567, %v574
  %v576 = vrot.slane %v571, 4
  %v577 = vsel %vm172, %v576, %v561
  %v578 = vrot.slane %v561, 4
  %v579 = vsel %vm172, %v571, %v578
  %v581 = vunpack.c.l.s4 1934713408
  %v582 = vunpack.c.0.s8 %v581
  %v583 = vperm.slane %v577, %v582
  %v585 = vunpack.c.l.s4 1934713408
  %v586 = vunpack.c.0.s8 %v585
  %v587 = vperm.slane %v579, %v586
  %v588 = vrot.slane %v575, 4
  %v589 = vsel %vm172, %v588, %v565
  %v590 = vrot.slane %v565, 4
  %v591 = vsel %vm172, %v575, %v590
  %v593 = vunpack.c.l.s4 1934713408
  %v594 = vunpack.c.0.s8 %v593
  %v595 = vperm.slane %v589, %v594
  %v597 = vunpack.c.l.s4 1934713408
  %v598 = vunpack.c.0.s8 %v597
  %v599 = vperm.slane %v591, %v598
  %v600 = vrot.slane %v583, 4
  %v601 = vsel %vm172, 0.0, %v600
  %v602 = vrot.slane %v587, 4
  %v603 = vsel %vm172, 0.0, %v602
  %v604 = vrot.slane %v595, 4
  %v605 = vsel %vm172, 0.0, %v604
  %v606 = vrot.slane %v599, 4
  %v607 = vsel %vm172, 0.0, %v606
  %v608 = vrot.slane %v547, 4
  %v609 = vsel %vm172, 0.0, %v608
  %v611 = vunpack.c.l.s4 1983009808
  %v612 = vunpack.c.0.s8 %v611
  %v613 = vperm.slane %v547, %v612
  %v615 = vunpack.c.l.s4 1983009808
  %v616 = vunpack.c.0.s8 %v615
  %v617 = vperm.slane %v609, %v616
  %v618 = vrot.slane %v551, 4
  %v619 = vsel %vm172, 0.0, %v618
  %v621 = vunpack.c.l.s4 1983009808
  %v622 = vunpack.c.0.s8 %v621
  %v623 = vperm.slane %v551, %v622
  %v625 = vunpack.c.l.s4 1983009808
  %v626 = vunpack.c.0.s8 %v625
  %v627 = vperm.slane %v619, %v626
  %v628 = vrot.slane %v623, 4
  %v629 = vsel %vm172, %v628, %v613
  %v630 = vrot.slane %v613, 4
  %v631 = vsel %vm172, %v623, %v630
  %v633 = vunpack.c.l.s4 1934713408
  %v634 = vunpack.c.0.s8 %v633
  %v635 = vperm.slane %v629, %v634
  %v637 = vunpack.c.l.s4 1934713408
  %v638 = vunpack.c.0.s8 %v637
  %v639 = vperm.slane %v631, %v638
  %v640 = vrot.slane %v627, 4
  %v641 = vsel %vm172, %v640, %v617
  %v642 = vrot.slane %v617, 4
  %v643 = vsel %vm172, %v627, %v642
  %v645 = vunpack.c.l.s4 1934713408
  %v646 = vunpack.c.0.s8 %v645
  %v647 = vperm.slane %v641, %v646
  %v649 = vunpack.c.l.s4 1934713408
  %v650 = vunpack.c.0.s8 %v649
  %v651 = vperm.slane %v643, %v650
  %v652 = vrot.slane %v635, 4
  %v653 = vsel %vm172, 0.0, %v652
  %v654 = vrot.slane %v639, 4
  %v655 = vsel %vm172, 0.0, %v654
  %v656 = vrot.slane %v647, 4
  %v657 = vsel %vm172, 0.0, %v656
  %v658 = vrot.slane %v651, 4
  %v659 = vsel %vm172, 0.0, %v658
  %v660 = vsel %vm172, %v602, %v583
  %v662 = vunpack.c.l.s4 1983009808
  %v663 = vunpack.c.0.s8 %v662
  %v664 = vperm.slane %v660, %v663
  %v665 = vrot.slane %v603, 4
  %v666 = vsel %vm172, %v665, %v601
  %v668 = vunpack.c.l.s4 1983009808
  %v669 = vunpack.c.0.s8 %v668
  %v670 = vperm.slane %v666, %v669
  %v671 = vsel %vm172, %v606, %v595
  %v673 = vunpack.c.l.s4 1983009808
  %v674 = vunpack.c.0.s8 %v673
  %v675 = vperm.slane %v671, %v674
  %v676 = vrot.slane %v607, 4
  %v677 = vsel %vm172, %v676, %v605
  %v679 = vunpack.c.l.s4 1983009808
  %v680 = vunpack.c.0.s8 %v679
  %v681 = vperm.slane %v677, %v680
  %v682 = vrot.slane %v670, 4
  %v683 = vsel %vm172, %v682, %v664
  %v685 = vunpack.c.l.s4 1934713408
  %v686 = vunpack.c.0.s8 %v685
  %v687 = vperm.slane %v683, %v686
  %v688 = vrot.slane %v681, 4
  %v689 = vsel %vm172, %v688, %v675
  %v691 = vunpack.c.l.s4 1934713408
  %v692 = vunpack.c.0.s8 %v691
  %v693 = vperm.slane %v689, %v692
  %v694 = vrot.slane %v693, 4
  %v695 = vsel %vm172, %v694, %v687
  %v696 = vrot.slane %v687, 4
  %v697 = vsel %vm172, %v693, %v696
  %v698 = vsel %vm172, %v654, %v635
  %v700 = vunpack.c.l.s4 1983009808
  %v701 = vunpack.c.0.s8 %v700
  %v702 = vperm.slane %v698, %v701
  %v703 = vrot.slane %v655, 4
  %v704 = vsel %vm172, %v703, %v653
  %v706 = vunpack.c.l.s4 1983009808
  %v707 = vunpack.c.0.s8 %v706
  %v708 = vperm.slane %v704, %v707
  %v709 = vsel %vm172, %v658, %v647
  %v711 = vunpack.c.l.s4 1983009808
  %v712 = vunpack.c.0.s8 %v711
  %v713 = vperm.slane %v709, %v712
  %v714 = vrot.slane %v659, 4
  %v715 = vsel %vm172, %v714, %v657
  %v717 = vunpack.c.l.s4 1983009808
  %v718 = vunpack.c.0.s8 %v717
  %v719 = vperm.slane %v715, %v718
  %v720 = vrot.slane %v708, 4
  %v721 = vsel %vm172, %v720, %v702
  %v723 = vunpack.c.l.s4 1934713408
  %v724 = vunpack.c.0.s8 %v723
  %v725 = vperm.slane %v721, %v724
  %v726 = vrot.slane %v719, 4
  %v727 = vsel %vm172, %v726, %v713
  %v729 = vunpack.c.l.s4 1934713408
  %v730 = vunpack.c.0.s8 %v729
  %v731 = vperm.slane %v727, %v730
  %v732 = vrot.slane %v731, 4
  %v733 = vsel %vm172, %v732, %v725
  %v734 = vrot.slane %v725, 4
  %v735 = vsel %vm172, %v731, %v734
  %v736 = vpack.c.bf16 %v311, %v311
  %v737 = vpack.c.bf16 %v349, %v349
  %v738 = vpack.c.bf16 %v313, %v313
  %v739 = vpack.c.bf16 %v351, %v351
  %v740 = vpack.c.bf16 %v503, %v503
  %v741 = vpack.c.bf16 %v541, %v541
  %v742 = vpack.c.bf16 %v505, %v505
  %v743 = vpack.c.bf16 %v543, %v543
  %v746 = vunpack.c.l.b16 %v736
  %v747 = vunpack.c.l.b16 %v737
  %v748 = vpack.c.b16 %v747, %v746
  %v751 = vunpack.c.l.b16 %v740
  %v752 = vunpack.c.l.b16 %v741
  %v753 = vpack.c.b16 %v752, %v751
  %vm754 = vcmask 130048
  %v756 = vsel %vm754, %v748, 0
  %v759 = vsel %vm754, %v753, 0
  %761 = vmatpush.bf16.xpose.msra.mxu0 0
  %762 = vmatpush.bf16.xpose.msra.mxu0 0
  %763 = vmatpush.bf16.xpose.msra.mxu0 0
  %764 = vmatpush.bf16.xpose.msra.mxu0 0
  %765 = vmatpush.bf16.xpose.msra.mxu0 0
  %766 = vmatpush.bf16.xpose.msra.mxu0 0
  %767 = vmatpush.bf16.xpose.msra.mxu0 0
  %768 = vmatpush.bf16.xpose.msra.mxu0 %v759
  %769 = vmatmul.bf16.gmra.mxu0 %v756
  %v770 = vpop.f32.mrf.mxu0
  %v771 = vadd.f32 0.0, %v770
  %v772 = vpop.f32.mrf.mxu0
  %v773 = vadd.f32 0.0, %v772
  %774 = vdwg.mxu0
  %v777 = vunpack.c.l.b16 %v738
  %v778 = vunpack.c.l.b16 %v739
  %v779 = vpack.c.b16 %v778, %v777
  %v782 = vunpack.c.l.b16 %v742
  %v783 = vunpack.c.l.b16 %v743
  %v784 = vpack.c.b16 %v783, %v782
  %v786 = vsel %vm754, %v779, 0
  %v789 = vsel %vm754, %v784, 0
  %791 = vmatpush.bf16.xpose.msra.mxu0 0
  %792 = vmatpush.bf16.xpose.msra.mxu0 0
  %793 = vmatpush.bf16.xpose.msra.mxu0 0
  %794 = vmatpush.bf16.xpose.msra.mxu0 0
  %795 = vmatpush.bf16.xpose.msra.mxu0 0
  %796 = vmatpush.bf16.xpose.msra.mxu0 0
  %797 = vmatpush.bf16.xpose.msra.mxu0 0
  %798 = vmatpush.bf16.xpose.msra.mxu0 %v789
  %799 = vmatmul.bf16.gmra.mxu0 %v786
  %v800 = vpop.f32.mrf.mxu0
  %v801 = vadd.f32 0.0, %v800
  %v802 = vpop.f32.mrf.mxu0
  %v803 = vadd.f32 0.0, %v802
  %804 = vdwg.mxu0
  %v805 = vmul.f32 %v771, 0.25
  %v806 = vmul.f32 %v773, 0.25
  %v807 = vmul.f32 %v801, 0.25
  %v808 = vmul.f32 %v803, 0.25
  %v809 = vadd.f32 %v805, %v59
  %v810 = vadd.f32 %v806, %v60
  %v811 = vadd.f32 %v807, %v59
  %v812 = vadd.f32 %v808, %v60
  %v813 = vsel %vm754, %v809, -inf
  %814 = vmax.xlane.f32.xlu0 %v813
  %v815 = vpop.xlane.xlu0 %814
  %v816 = vsel %vm754, %v810, -inf
  %817 = vmax.xlane.f32.xlu0 %v816
  %v818 = vpop.xlane.xlu0 %817
  %v819 = vsel %vm754, %v811, -inf
  %820 = vmax.xlane.f32.xlu0 %v819
  %v821 = vpop.xlane.xlu0 %820
  %v822 = vsel %vm754, %v812, -inf
  %823 = vmax.xlane.f32.xlu0 %v822
  %v824 = vpop.xlane.xlu0 %823
  %v825 = vsub.f32 %v809, %v815
  %v826 = vsub.f32 %v810, %v818
  %v827 = vsub.f32 %v811, %v821
  %v828 = vsub.f32 %v812, %v824
  %v829 = vmul.f32 %v825, 1.442695
  %v830 = vpow.pop %v829
  %v831 = vmul.f32 %v826, 1.442695
  %v832 = vpow.pop %v831
  %v833 = vmul.f32 %v827, 1.442695
  %v834 = vpow.pop %v833
  %v835 = vmul.f32 %v828, 1.442695
  %v836 = vpow.pop %v835
  %v837 = vsel %vm754, %v830, 0.0
  %838 = vadd.xlane.f32.xlu0 %v837
  %v839 = vpop.xlane.xlu0 %838
  %v840 = vsel %vm754, %v832, 0.0
  %841 = vadd.xlane.f32.xlu0 %v840
  %v842 = vpop.xlane.xlu0 %841
  %v843 = vsel %vm754, %v834, 0.0
  %844 = vadd.xlane.f32.xlu0 %v843
  %v845 = vpop.xlane.xlu0 %844
  %v846 = vsel %vm754, %v836, 0.0
  %847 = vadd.xlane.f32.xlu0 %v846
  %v848 = vpop.xlane.xlu0 %847
  %v849 = vrcp.pop %v839
  %v850 = vrcp.pop %v842
  %v851 = vrcp.pop %v845
  %v852 = vrcp.pop %v848
  %v853 = vmul.f32 %v830, %v849
  %v854 = vmul.f32 %v832, %v850
  %v855 = vmul.f32 %v834, %v851
  %v856 = vmul.f32 %v836, %v852
  %v857 = vpack.c.bf16 %v853, %v853
  %v858 = vpack.c.bf16 %v854, %v854
  %v859 = vpack.c.bf16 %v855, %v855
  %v860 = vpack.c.bf16 %v856, %v856
  %v861 = vpack.c.bf16 %v695, %v695
  %v862 = vpack.c.bf16 %v733, %v733
  %v863 = vpack.c.bf16 %v697, %v697
  %v864 = vpack.c.bf16 %v735, %v735
  %v867 = vunpack.c.l.b16 %v857
  %v868 = vunpack.c.l.b16 %v858
  %v869 = vpack.c.b16 %v868, %v867
  %v872 = vunpack.c.l.b16 %v861
  %v873 = vunpack.c.l.b16 %v862
  %v874 = vpack.c.b16 %v873, %v872
  %v877 = vsel %vm754, %v869, 0
  %879 = vmatpush.bf16.msra.mxu0 0
  %880 = vmatpush.bf16.msra.mxu0 0
  %881 = vmatpush.bf16.msra.mxu0 0
  %882 = vmatpush.bf16.msra.mxu0 0
  %883 = vmatpush.bf16.msra.mxu0 0
  %884 = vmatpush.bf16.msra.mxu0 0
  %885 = vmatpush.bf16.msra.mxu0 0
  %886 = vmatpush.bf16.msra.mxu0 %v874
  %887 = vmatmul.bf16.gmra.mxu0 %v877
  %v888 = vpop.f32.mrf.mxu0
  %v889 = vadd.f32 0.0, %v888
  %v890 = vpop.f32.mrf.mxu0
  %v891 = vadd.f32 0.0, %v890
  %892 = vdwg.mxu0
  %v895 = vunpack.c.l.b16 %v859
  %v896 = vunpack.c.l.b16 %v860
  %v897 = vpack.c.b16 %v896, %v895
  %v900 = vunpack.c.l.b16 %v863
  %v901 = vunpack.c.l.b16 %v864
  %v902 = vpack.c.b16 %v901, %v900
  %v905 = vsel %vm754, %v897, 0
  %907 = vmatpush.bf16.msra.mxu0 0
  %908 = vmatpush.bf16.msra.mxu0 0
  %909 = vmatpush.bf16.msra.mxu0 0
  %910 = vmatpush.bf16.msra.mxu0 0
  %911 = vmatpush.bf16.msra.mxu0 0
  %912 = vmatpush.bf16.msra.mxu0 0
  %913 = vmatpush.bf16.msra.mxu0 0
  %914 = vmatpush.bf16.msra.mxu0 %v902
  %915 = vmatmul.bf16.gmra.mxu0 %v905
  %v916 = vpop.f32.mrf.mxu0
  %v917 = vadd.f32 0.0, %v916
  %v918 = vpop.f32.mrf.mxu0
  %v919 = vadd.f32 0.0, %v918
  %920 = vdwg.mxu0
  %v921 = vrot.slane %v889, 4
  %v922 = vsel %vm172, 0.0, %v921
  %v924 = vunpack.c.l.s4 1983009808
  %v925 = vunpack.c.0.s8 %v924
  %v926 = vperm.slane %v889, %v925
  %v928 = vunpack.c.l.s4 1983009808
  %v929 = vunpack.c.0.s8 %v928
  %v930 = vperm.slane %v922, %v929
  %v931 = vrot.slane %v917, 4
  %v932 = vsel %vm172, 0.0, %v931
  %v934 = vunpack.c.l.s4 1983009808
  %v935 = vunpack.c.0.s8 %v934
  %v936 = vperm.slane %v917, %v935
  %v938 = vunpack.c.l.s4 1983009808
  %v939 = vunpack.c.0.s8 %v938
  %v940 = vperm.slane %v932, %v939
  %v941 = vrot.slane %v936, 4
  %v942 = vsel %vm172, %v941, %v926
  %v943 = vrot.slane %v926, 4
  %v944 = vsel %vm172, %v936, %v943
  %v946 = vunpack.c.l.s4 1934713408
  %v947 = vunpack.c.0.s8 %v946
  %v948 = vperm.slane %v942, %v947
  %v950 = vunpack.c.l.s4 1934713408
  %v951 = vunpack.c.0.s8 %v950
  %v952 = vperm.slane %v944, %v951
  %v953 = vrot.slane %v940, 4
  %v954 = vsel %vm172, %v953, %v930
  %v955 = vrot.slane %v930, 4
  %v956 = vsel %vm172, %v940, %v955
  %v958 = vunpack.c.l.s4 1934713408
  %v959 = vunpack.c.0.s8 %v958
  %v960 = vperm.slane %v954, %v959
  %v962 = vunpack.c.l.s4 1934713408
  %v963 = vunpack.c.0.s8 %v962
  %v964 = vperm.slane %v956, %v963
  %v965 = vrot.slane %v948, 4
  %v966 = vsel %vm172, 0.0, %v965
  %v967 = vrot.slane %v952, 4
  %v968 = vsel %vm172, 0.0, %v967
  %v969 = vrot.slane %v960, 4
  %v970 = vsel %vm172, 0.0, %v969
  %v971 = vrot.slane %v964, 4
  %v972 = vsel %vm172, 0.0, %v971
  %v973 = vrot.slane %v891, 4
  %v974 = vsel %vm172, 0.0, %v973
  %v976 = vunpack.c.l.s4 1983009808
  %v977 = vunpack.c.0.s8 %v976
  %v978 = vperm.slane %v891, %v977
  %v980 = vunpack.c.l.s4 1983009808
  %v981 = vunpack.c.0.s8 %v980
  %v982 = vperm.slane %v974, %v981
  %v983 = vrot.slane %v919, 4
  %v984 = vsel %vm172, 0.0, %v983
  %v986 = vunpack.c.l.s4 1983009808
  %v987 = vunpack.c.0.s8 %v986
  %v988 = vperm.slane %v919, %v987
  %v990 = vunpack.c.l.s4 1983009808
  %v991 = vunpack.c.0.s8 %v990
  %v992 = vperm.slane %v984, %v991
  %v993 = vrot.slane %v988, 4
  %v994 = vsel %vm172, %v993, %v978
  %v995 = vrot.slane %v978, 4
  %v996 = vsel %vm172, %v988, %v995
  %v998 = vunpack.c.l.s4 1934713408
  %v999 = vunpack.c.0.s8 %v998
  %v1000 = vperm.slane %v994, %v999
  %v1002 = vunpack.c.l.s4 1934713408
  %v1003 = vunpack.c.0.s8 %v1002
  %v1004 = vperm.slane %v996, %v1003
  %v1005 = vrot.slane %v992, 4
  %v1006 = vsel %vm172, %v1005, %v982
  %v1007 = vrot.slane %v982, 4
  %v1008 = vsel %vm172, %v992, %v1007
  %v1010 = vunpack.c.l.s4 1934713408
  %v1011 = vunpack.c.0.s8 %v1010
  %v1012 = vperm.slane %v1006, %v1011
  %v1014 = vunpack.c.l.s4 1934713408
  %v1015 = vunpack.c.0.s8 %v1014
  %v1016 = vperm.slane %v1008, %v1015
  %v1017 = vrot.slane %v1000, 4
  %v1018 = vsel %vm172, 0.0, %v1017
  %v1019 = vrot.slane %v1004, 4
  %v1020 = vsel %vm172, 0.0, %v1019
  %v1021 = vrot.slane %v1012, 4
  %v1022 = vsel %vm172, 0.0, %v1021
  %v1023 = vrot.slane %v1016, 4
  %v1024 = vsel %vm172, 0.0, %v1023
  %v1025 = vsel %vm172, %v967, %v948
  %v1027 = vunpack.c.l.s4 1983009808
  %v1028 = vunpack.c.0.s8 %v1027
  %v1029 = vperm.slane %v1025, %v1028
  %v1030 = vrot.slane %v968, 4
  %v1031 = vsel %vm172, %v1030, %v966
  %v1033 = vunpack.c.l.s4 1983009808
  %v1034 = vunpack.c.0.s8 %v1033
  %v1035 = vperm.slane %v1031, %v1034
  %v1036 = vsel %vm172, %v971, %v960
  %v1038 = vunpack.c.l.s4 1983009808
  %v1039 = vunpack.c.0.s8 %v1038
  %v1040 = vperm.slane %v1036, %v1039
  %v1041 = vrot.slane %v972, 4
  %v1042 = vsel %vm172, %v1041, %v970
  %v1044 = vunpack.c.l.s4 1983009808
  %v1045 = vunpack.c.0.s8 %v1044
  %v1046 = vperm.slane %v1042, %v1045
  %v1047 = vrot.slane %v1035, 4
  %v1048 = vsel %vm172, %v1047, %v1029
  %v1050 = vunpack.c.l.s4 1934713408
  %v1051 = vunpack.c.0.s8 %v1050
  %v1052 = vperm.slane %v1048, %v1051
  %v1053 = vrot.slane %v1046, 4
  %v1054 = vsel %vm172, %v1053, %v1040
  %v1056 = vunpack.c.l.s4 1934713408
  %v1057 = vunpack.c.0.s8 %v1056
  %v1058 = vperm.slane %v1054, %v1057
  %v1059 = vrot.slane %v1058, 4
  %v1060 = vsel %vm172, %v1059, %v1052
  %v1061 = vrot.slane %v1052, 4
  %v1062 = vsel %vm172, %v1058, %v1061
  %v1063 = vsel %vm172, %v1019, %v1000
  %v1065 = vunpack.c.l.s4 1983009808
  %v1066 = vunpack.c.0.s8 %v1065
  %v1067 = vperm.slane %v1063, %v1066
  %v1068 = vrot.slane %v1020, 4
  %v1069 = vsel %vm172, %v1068, %v1018
  %v1071 = vunpack.c.l.s4 1983009808
  %v1072 = vunpack.c.0.s8 %v1071
  %v1073 = vperm.slane %v1069, %v1072
  %v1074 = vsel %vm172, %v1023, %v1012
  %v1076 = vunpack.c.l.s4 1983009808
  %v1077 = vunpack.c.0.s8 %v1076
  %v1078 = vperm.slane %v1074, %v1077
  %v1079 = vrot.slane %v1024, 4
  %v1080 = vsel %vm172, %v1079, %v1022
  %v1082 = vunpack.c.l.s4 1983009808
  %v1083 = vunpack.c.0.s8 %v1082
  %v1084 = vperm.slane %v1080, %v1083
  %v1085 = vrot.slane %v1073, 4
  %v1086 = vsel %vm172, %v1085, %v1067
  %v1088 = vunpack.c.l.s4 1934713408
  %v1089 = vunpack.c.0.s8 %v1088
  %v1090 = vperm.slane %v1086, %v1089
  %v1091 = vrot.slane %v1084, 4
  %v1092 = vsel %vm172, %v1091, %v1078
  %v1094 = vunpack.c.l.s4 1934713408
  %v1095 = vunpack.c.0.s8 %v1094
  %v1096 = vperm.slane %v1092, %v1095
  %v1097 = vrot.slane %v1096, 4
  %v1098 = vsel %vm172, %v1097, %v1090
  %v1099 = vrot.slane %v1090, 4
  %v1100 = vsel %vm172, %v1096, %v1099
  %1103 = vrot.lane.b32.xlu0 %v1062, 16
  %v1104 = vpop.permute.xlu0 %1103
  %1105 = vrot.lane.b32.xlu0 %v1100, 16
  %v1106 = vpop.permute.xlu0 %1105
  %v1109 = vsel %vm754, %v1060, %v1104
  %v1110 = vsel %vm754, %v1098, %v1106
  %v1111 = vpack.c.bf16 %v1110, %v1109
  %v1112 = vld [vmem:[%s6] sm:$0xf]
  %v1113 = vld [vmem:[%s6 + $0x4] sm:$0xf]
  %v1114 = vld [vmem:[%s6 + $0x8] sm:$0xf]
  %v1115 = vld [vmem:[%s6 + $0xc] sm:$0xf]
  %v1116 = vld [vmem:[%s7] sm:$0x1]
  %v1118 = vperm.slane %v1116, 0
  %v1124 = vunpack.c.l.b16 %v1112
  %v1125 = vunpack.c.l.b16 %v1113
  %v1126 = vunpack.c.l.b16 %v1114
  %v1127 = vunpack.c.l.b16 %v1115
  %v1128 = vpack.c.b16 %v1125, %v1124
  %v1129 = vpack.c.b16 %v1127, %v1126
  %v1133 = vsel %vm63, %v1111, 0
  %1135 = vmatpush.bf16.msra.mxu0 0
  %1136 = vmatpush.bf16.msra.mxu0 0
  %1137 = vmatpush.bf16.msra.mxu0 0
  %1138 = vmatpush.bf16.msra.mxu0 0
  %1139 = vmatpush.bf16.msra.mxu0 0
  %1140 = vmatpush.bf16.msra.mxu0 0
  %1141 = vmatpush.bf16.msra.mxu0 %v1129
  %1142 = vmatpush.bf16.msra.mxu0 %v1128
  %1143 = vmatmul.bf16.gmra.mxu0 %v1133
  %v1144 = vpop.f32.mrf.mxu0
  %v1145 = vadd.f32 %v1118, %v1144
  %v1146 = vpop.f32.mrf.mxu0
  %v1147 = vadd.f32 %v1118, %v1146
  %1148 = vdwg.mxu0
  %v1149 = vadd.f32 %v57, %v1145
  %v1150 = vadd.f32 %v58, %v1147
  %v1151 = vld [vmem:[%s8] sm:$0x1]
  %v1152 = vld [vmem:[%s9] sm:$0x1]
  %v1153 = vsel %vm63, %v1149, 0.0
  %1154 = vadd.xlane.f32.xlu0 %v1153
  %v1155 = vpop.xlane.xlu0 %1154
  %v1156 = vsel %vm63, %v1150, 0.0
  %1157 = vadd.xlane.f32.xlu0 %v1156
  %v1158 = vpop.xlane.xlu0 %1157
  %v1159 = vmul.f32 %v1155, %v76
  %v1160 = vmul.f32 %v1158, %v76
  %v1161 = vsub.f32 %v1149, %v1159
  %v1162 = vsub.f32 %v1150, %v1160
  %v1163 = vmul.f32 %v1161, %v1161
  %v1164 = vmul.f32 %v1162, %v1162
  %v1165 = vsel %vm63, %v1163, 0.0
  %1166 = vadd.xlane.f32.xlu0 %v1165
  %v1167 = vpop.xlane.xlu0 %1166
  %v1168 = vsel %vm63, %v1164, 0.0
  %1169 = vadd.xlane.f32.xlu0 %v1168
  %v1170 = vpop.xlane.xlu0 %1169
  %v1171 = vmul.f32 %v1167, %v76
  %v1172 = vmul.f32 %v1170, %v76
  %v1173 = vadd.f32 %v1171, 1e-05
  %v1174 = vadd.f32 %v1172, 1e-05
  %v1175 = vrsqrt.pop %v1173
  %v1176 = vmul.f32 %v1175, %v1173
  %v1177 = vmul.f32 %v1176, %v1175
  %v1178 = vmul.f32 0.5, %v1177
  %v1179 = vsub.f32 1.5, %v1178
  %v1180 = vmul.f32 %v1175, %v1179
  %vm1181 = vweird.f32 %v1173
  %vm1182 = vweird.f32 %v1175
  %vm1183 = vmor %vm1181, %vm1182
  %v1184 = vsel %vm1183, %v1175, %v1180
  %v1185 = vrsqrt.pop %v1174
  %v1186 = vmul.f32 %v1185, %v1174
  %v1187 = vmul.f32 %v1186, %v1185
  %v1188 = vmul.f32 0.5, %v1187
  %v1189 = vsub.f32 1.5, %v1188
  %v1190 = vmul.f32 %v1185, %v1189
  %vm1191 = vweird.f32 %v1174
  %vm1192 = vweird.f32 %v1185
  %vm1193 = vmor %vm1191, %vm1192
  %v1194 = vsel %vm1193, %v1185, %v1190
  %v1195 = vmul.f32 %v1161, %v1184
  %v1196 = vmul.f32 %v1162, %v1194
  %v1198 = vperm.slane %v1151, 0
  %v1200 = vmul.f32 %v1195, %v1198
  %v1201 = vmul.f32 %v1196, %v1198
  %v1203 = vperm.slane %v1152, 0
  %v1205 = vadd.f32 %v1200, %v1203
  %v1206 = vadd.f32 %v1201, %v1203
  %v1207 = vpack.c.bf16 %v1206, %v1205
  %v1208 = vld [vmem:[%s10] sm:$0xf]
  %v1209 = vld [vmem:[%s10 + $0x4] sm:$0xf]
  %v1210 = vld [vmem:[%s10 + $0x8] sm:$0xf]
  %v1211 = vld [vmem:[%s10 + $0xc] sm:$0xf]
  %v1212 = vld [vmem:[%s11] sm:$0x1]
  %v1214 = vperm.slane %v1212, 0
  %v1220 = vunpack.c.l.b16 %v1208
  %v1221 = vunpack.c.l.b16 %v1209
  %v1222 = vunpack.c.l.b16 %v1210
  %v1223 = vunpack.c.l.b16 %v1211
  %v1224 = vpack.c.b16 %v1221, %v1220
  %v1225 = vpack.c.b16 %v1223, %v1222
  %v1229 = vsel %vm63, %v1207, 0
  %1231 = vmatpush.bf16.msra.mxu0 0
  %1232 = vmatpush.bf16.msra.mxu0 0
  %1233 = vmatpush.bf16.msra.mxu0 0
  %1234 = vmatpush.bf16.msra.mxu0 0
  %1235 = vmatpush.bf16.msra.mxu0 0
  %1236 = vmatpush.bf16.msra.mxu0 0
  %1237 = vmatpush.bf16.msra.mxu0 %v1225
  %1238 = vmatpush.bf16.msra.mxu0 %v1224
  %1239 = vmatmul.bf16.gmra.mxu0 %v1229
  %v1240 = vpop.f32.mrf.mxu0
  %v1241 = vadd.f32 %v1214, %v1240
  %v1242 = vpop.f32.mrf.mxu0
  %v1243 = vadd.f32 %v1214, %v1242
  %1244 = vdwg.mxu0
  %v1245 = vmul.f32 %v1241, 0.5
  %v1246 = vmul.f32 %v1243, 0.5
  %v1247 = vmul.f32 %v1241, 0.044715
  %v1248 = vmul.f32 %v1243, 0.044715
  %v1249 = vmul.f32 %v1247, %v1241
  %v1250 = vmul.f32 %v1248, %v1243
  %v1251 = vmul.f32 %v1249, %v1241
  %v1252 = vmul.f32 %v1250, %v1243
  %v1253 = vadd.f32 %v1241, %v1251
  %v1254 = vadd.f32 %v1243, %v1252
  %v1255 = vmul.f32 %v1253, 0.7978846
  %v1256 = vmul.f32 %v1254, 0.7978846
  %v1257 = vtanh.pop %v1255
  %v1258 = vtanh.pop %v1256
  %v1259 = vadd.f32 %v1257, 1.0
  %v1260 = vadd.f32 %v1258, 1.0
  %v1261 = vmul.f32 %v1245, %v1259
  %v1262 = vmul.f32 %v1246, %v1260
  %v1263 = vpack.c.bf16 %v1262, %v1261
  %v1264 = vld [vmem:[%s12] sm:$0xf]
  %v1265 = vld [vmem:[%s12 + $0x4] sm:$0xf]
  %v1266 = vld [vmem:[%s12 + $0x8] sm:$0xf]
  %v1267 = vld [vmem:[%s12 + $0xc] sm:$0xf]
  %v1268 = vld [vmem:[%s12 + $0x10] sm:$0xf]
  %v1269 = vld [vmem:[%s12 + $0x14] sm:$0xf]
  %v1270 = vld [vmem:[%s12 + $0x18] sm:$0xf]
  %v1271 = vld [vmem:[%s12 + $0x1c] sm:$0xf]
  %v1272 = vld [vmem:[%s12 + $0x20] sm:$0xf]
  %v1273 = vld [vmem:[%s12 + $0x24] sm:$0xf]
  %v1274 = vld [vmem:[%s12 + $0x28] sm:$0xf]
  %v1275 = vld [vmem:[%s12 + $0x2c] sm:$0xf]
  %v1276 = vld [vmem:[%s12 + $0x30] sm:$0xf]
  %v1277 = vld [vmem:[%s12 + $0x34] sm:$0xf]
  %v1278 = vld [vmem:[%s12 + $0x38] sm:$0xf]
  %v1279 = vld [vmem:[%s12 + $0x3c] sm:$0xf]
  %v1280 = vld [vmem:[%s13] sm:$0x1]
  %v1282 = vperm.slane %v1280, 0
  %v1300 = vunpack.c.l.b16 %v1264
  %v1301 = vunpack.c.l.b16 %v1265
  %v1302 = vunpack.c.l.b16 %v1266
  %v1303 = vunpack.c.l.b16 %v1267
  %v1304 = vunpack.c.l.b16 %v1268
  %v1305 = vunpack.c.l.b16 %v1269
  %v1306 = vunpack.c.l.b16 %v1270
  %v1307 = vunpack.c.l.b16 %v1271
  %v1308 = vunpack.c.l.b16 %v1272
  %v1309 = vunpack.c.l.b16 %v1273
  %v1310 = vunpack.c.l.b16 %v1274
  %v1311 = vunpack.c.l.b16 %v1275
  %v1312 = vunpack.c.l.b16 %v1276
  %v1313 = vunpack.c.l.b16 %v1277
  %v1314 = vunpack.c.l.b16 %v1278
  %v1315 = vunpack.c.l.b16 %v1279
  %v1316 = vpack.c.b16 %v1301, %v1300
  %v1317 = vpack.c.b16 %v1303, %v1302
  %v1318 = vpack.c.b16 %v1305, %v1304
  %v1319 = vpack.c.b16 %v1307, %v1306
  %v1320 = vpack.c.b16 %v1309, %v1308
  %v1321 = vpack.c.b16 %v1311, %v1310
  %v1322 = vpack.c.b16 %v1313, %v1312
  %v1323 = vpack.c.b16 %v1315, %v1314
  %1332 = vmatpush.bf16.msra.mxu0 %v1323
  %1333 = vmatpush.bf16.msra.mxu0 %v1322
  %1334 = vmatpush.bf16.msra.mxu0 %v1321
  %1335 = vmatpush.bf16.msra.mxu0 %v1320
  %1336 = vmatpush.bf16.msra.mxu0 %v1319
  %1337 = vmatpush.bf16.msra.mxu0 %v1318
  %1338 = vmatpush.bf16.msra.mxu0 %v1317
  %1339 = vmatpush.bf16.msra.mxu0 %v1316
  %1340 = vmatmul.bf16.gmra.mxu0 %v1263
  %v1341 = vpop.f32.mrf.mxu0
  %v1342 = vadd.f32 %v1282, %v1341
  %v1343 = vpop.f32.mrf.mxu0
  %v1344 = vadd.f32 %v1282, %v1343
  %1345 = vdwg.mxu0
  %v1346 = vadd.f32 %v1149, %v1342
  %v1347 = vadd.f32 %v1150, %v1344
  %s1348 = scalar_lea.vmem %s2, 1
  %v1349 = vld [vmem:[%s1348] sm:$0x1]
  %s1350 = scalar_lea.vmem %s3, 1
  %v1351 = vld [vmem:[%s1350] sm:$0x1]
  %v1352 = vsel %vm63, %v1346, 0.0
  %1353 = vadd.xlane.f32.xlu0 %v1352
  %v1354 = vpop.xlane.xlu0 %1353
  %v1355 = vsel %vm63, %v1347, 0.0
  %1356 = vadd.xlane.f32.xlu0 %v1355
  %v1357 = vpop.xlane.xlu0 %1356
  %v1358 = vmul.f32 %v1354, %v76
  %v1359 = vmul.f32 %v1357, %v76
  %v1360 = vsub.f32 %v1346, %v1358
  %v1361 = vsub.f32 %v1347, %v1359
  %v1362 = vmul.f32 %v1360, %v1360
  %v1363 = vmul.f32 %v1361, %v1361
  %v1364 = vsel %vm63, %v1362, 0.0
  %1365 = vadd.xlane.f32.xlu0 %v1364
  %v1366 = vpop.xlane.xlu0 %1365
  %v1367 = vsel %vm63, %v1363, 0.0
  %1368 = vadd.xlane.f32.xlu0 %v1367
  %v1369 = vpop.xlane.xlu0 %1368
  %v1370 = vmul.f32 %v1366, %v76
  %v1371 = vmul.f32 %v1369, %v76
  %v1372 = vadd.f32 %v1370, 1e-05
  %v1373 = vadd.f32 %v1371, 1e-05
  %v1374 = vrsqrt.pop %v1372
  %v1375 = vmul.f32 %v1374, %v1372
  %v1376 = vmul.f32 %v1375, %v1374
  %v1377 = vmul.f32 0.5, %v1376
  %v1378 = vsub.f32 1.5, %v1377
  %v1379 = vmul.f32 %v1374, %v1378
  %vm1380 = vweird.f32 %v1372
  %vm1381 = vweird.f32 %v1374
  %vm1382 = vmor %vm1380, %vm1381
  %v1383 = vsel %vm1382, %v1374, %v1379
  %v1384 = vrsqrt.pop %v1373
  %v1385 = vmul.f32 %v1384, %v1373
  %v1386 = vmul.f32 %v1385, %v1384
  %v1387 = vmul.f32 0.5, %v1386
  %v1388 = vsub.f32 1.5, %v1387
  %v1389 = vmul.f32 %v1384, %v1388
  %vm1390 = vweird.f32 %v1373
  %vm1391 = vweird.f32 %v1384
  %vm1392 = vmor %vm1390, %vm1391
  %v1393 = vsel %vm1392, %v1384, %v1389
  %v1394 = vmul.f32 %v1360, %v1383
  %v1395 = vmul.f32 %v1361, %v1393
  %v1397 = vperm.slane %v1349, 0
  %v1399 = vmul.f32 %v1394, %v1397
  %v1400 = vmul.f32 %v1395, %v1397
  %v1402 = vperm.slane %v1351, 0
  %v1404 = vadd.f32 %v1399, %v1402
  %v1405 = vadd.f32 %v1400, %v1402
  %v1406 = vpack.c.bf16 %v1405, %v1404
  %s1407 = scalar_lea.vmem %s4, 16
  %v1408 = vld [vmem:[%s1407] sm:$0xf]
  %v1409 = vld [vmem:[%s1407 + $0x4] sm:$0xf]
  %v1410 = vld [vmem:[%s1407 + $0x8] sm:$0xf]
  %v1411 = vld [vmem:[%s1407 + $0xc] sm:$0xf]
  %s1412 = scalar_lea.vmem %s5, 1
  %v1413 = vld [vmem:[%s1412] sm:$0x1]
  %v1415 = vperm.slane %v1413, 0
  %v1421 = vunpack.c.l.b16 %v1408
  %v1422 = vunpack.c.l.b16 %v1409
  %v1423 = vunpack.c.l.b16 %v1410
  %v1424 = vunpack.c.l.b16 %v1411
  %v1425 = vpack.c.b16 %v1422, %v1421
  %v1426 = vpack.c.b16 %v1424, %v1423
  %v1430 = vsel %vm63, %v1406, 0
  %1432 = vmatpush.bf16.msra.mxu0 0
  %1433 = vmatpush.bf16.msra.mxu0 0
  %1434 = vmatpush.bf16.msra.mxu0 0
  %1435 = vmatpush.bf16.msra.mxu0 0
  %1436 = vmatpush.bf16.msra.mxu0 0
  %1437 = vmatpush.bf16.msra.mxu0 0
  %1438 = vmatpush.bf16.msra.mxu0 %v1426
  %1439 = vmatpush.bf16.msra.mxu0 %v1425
  %1440 = vmatmul.bf16.gmra.mxu0 %v1430
  %v1441 = vpop.f32.mrf.mxu0
  %v1442 = vadd.f32 %v1415, %v1441
  %v1443 = vpop.f32.mrf.mxu0
  %v1444 = vadd.f32 %v1415, %v1443
  %1445 = vdwg.mxu0
  %1448 = vrot.lane.b32.xlu0 %v1442, 112
  %v1449 = vpop.permute.xlu0 %1448
  %1450 = vrot.lane.b32.xlu0 %v1444, 112
  %v1451 = vpop.permute.xlu0 %1450
  %v1454 = vrot.slane %v1442, 4
  %v1455 = vsel %vm172, 0.0, %v1454
  %v1457 = vunpack.c.l.s4 1983009808
  %v1458 = vunpack.c.0.s8 %v1457
  %v1459 = vperm.slane %v1442, %v1458
  %v1461 = vunpack.c.l.s4 1983009808
  %v1462 = vunpack.c.0.s8 %v1461
  %v1463 = vperm.slane %v1455, %v1462
  %v1464 = vrot.slane %v1449, 4
  %v1465 = vsel %vm172, 0.0, %v1464
  %v1467 = vunpack.c.l.s4 1983009808
  %v1468 = vunpack.c.0.s8 %v1467
  %v1469 = vperm.slane %v1449, %v1468
  %v1471 = vunpack.c.l.s4 1983009808
  %v1472 = vunpack.c.0.s8 %v1471
  %v1473 = vperm.slane %v1465, %v1472
  %v1474 = vrot.slane %v1469, 4
  %v1475 = vsel %vm172, %v1474, %v1459
  %v1476 = vrot.slane %v1459, 4
  %v1477 = vsel %vm172, %v1469, %v1476
  %v1479 = vunpack.c.l.s4 1934713408
  %v1480 = vunpack.c.0.s8 %v1479
  %v1481 = vperm.slane %v1475, %v1480
  %v1483 = vunpack.c.l.s4 1934713408
  %v1484 = vunpack.c.0.s8 %v1483
  %v1485 = vperm.slane %v1477, %v1484
  %v1486 = vrot.slane %v1473, 4
  %v1487 = vsel %vm172, %v1486, %v1463
  %v1488 = vrot.slane %v1463, 4
  %v1489 = vsel %vm172, %v1473, %v1488
  %v1491 = vunpack.c.l.s4 1934713408
  %v1492 = vunpack.c.0.s8 %v1491
  %v1493 = vperm.slane %v1487, %v1492
  %v1495 = vunpack.c.l.s4 1934713408
  %v1496 = vunpack.c.0.s8 %v1495
  %v1497 = vperm.slane %v1489, %v1496
  %v1498 = vrot.slane %v1481, 4
  %v1499 = vsel %vm172, 0.0, %v1498
  %v1500 = vrot.slane %v1485, 4
  %v1501 = vsel %vm172, 0.0, %v1500
  %v1502 = vrot.slane %v1493, 4
  %v1503 = vsel %vm172, 0.0, %v1502
  %v1504 = vrot.slane %v1497, 4
  %v1505 = vsel %vm172, 0.0, %v1504
  %v1506 = vrot.slane %v1444, 4
  %v1507 = vsel %vm172, 0.0, %v1506
  %v1509 = vunpack.c.l.s4 1983009808
  %v1510 = vunpack.c.0.s8 %v1509
  %v1511 = vperm.slane %v1444, %v1510
  %v1513 = vunpack.c.l.s4 1983009808
  %v1514 = vunpack.c.0.s8 %v1513
  %v1515 = vperm.slane %v1507, %v1514
  %v1516 = vrot.slane %v1451, 4
  %v1517 = vsel %vm172, 0.0, %v1516
  %v1519 = vunpack.c.l.s4 1983009808
  %v1520 = vunpack.c.0.s8 %v1519
  %v1521 = vperm.slane %v1451, %v1520
  %v1523 = vunpack.c.l.s4 1983009808
  %v1524 = vunpack.c.0.s8 %v1523
  %v1525 = vperm.slane %v1517, %v1524
  %v1526 = vrot.slane %v1521, 4
  %v1527 = vsel %vm172, %v1526, %v1511
  %v1528 = vrot.slane %v1511, 4
  %v1529 = vsel %vm172, %v1521, %v1528
  %v1531 = vunpack.c.l.s4 1934713408
  %v1532 = vunpack.c.0.s8 %v1531
  %v1533 = vperm.slane %v1527, %v1532
  %v1535 = vunpack.c.l.s4 1934713408
  %v1536 = vunpack.c.0.s8 %v1535
  %v1537 = vperm.slane %v1529, %v1536
  %v1538 = vrot.slane %v1525, 4
  %v1539 = vsel %vm172, %v1538, %v1515
  %v1540 = vrot.slane %v1515, 4
  %v1541 = vsel %vm172, %v1525, %v1540
  %v1543 = vunpack.c.l.s4 1934713408
  %v1544 = vunpack.c.0.s8 %v1543
  %v1545 = vperm.slane %v1539, %v1544
  %v1547 = vunpack.c.l.s4 1934713408
  %v1548 = vunpack.c.0.s8 %v1547
  %v1549 = vperm.slane %v1541, %v1548
  %v1550 = vrot.slane %v1533, 4
  %v1551 = vsel %vm172, 0.0, %v1550
  %v1552 = vrot.slane %v1537, 4
  %v1553 = vsel %vm172, 0.0, %v1552
  %v1554 = vrot.slane %v1545, 4
  %v1555 = vsel %vm172, 0.0, %v1554
  %v1556 = vrot.slane %v1549, 4
  %v1557 = vsel %vm172, 0.0, %v1556
  %v1558 = vsel %vm172, %v1500, %v1481
  %v1560 = vunpack.c.l.s4 1983009808
  %v1561 = vunpack.c.0.s8 %v1560
  %v1562 = vperm.slane %v1558, %v1561
  %v1563 = vrot.slane %v1501, 4
  %v1564 = vsel %vm172, %v1563, %v1499
  %v1566 = vunpack.c.l.s4 1983009808
  %v1567 = vunpack.c.0.s8 %v1566
  %v1568 = vperm.slane %v1564, %v1567
  %v1569 = vsel %vm172, %v1504, %v1493
  %v1571 = vunpack.c.l.s4 1983009808
  %v1572 = vunpack.c.0.s8 %v1571
  %v1573 = vperm.slane %v1569, %v1572
  %v1574 = vrot.slane %v1505, 4
  %v1575 = vsel %vm172, %v1574, %v1503
  %v1577 = vunpack.c.l.s4 1983009808
  %v1578 = vunpack.c.0.s8 %v1577
  %v1579 = vperm.slane %v1575, %v1578
  %v1580 = vrot.slane %v1568, 4
  %v1581 = vsel %vm172, %v1580, %v1562
  %v1583 = vunpack.c.l.s4 1934713408
  %v1584 = vunpack.c.0.s8 %v1583
  %v1585 = vperm.slane %v1581, %v1584
  %v1586 = vrot.slane %v1579, 4
  %v1587 = vsel %vm172, %v1586, %v1573
  %v1589 = vunpack.c.l.s4 1934713408
  %v1590 = vunpack.c.0.s8 %v1589
  %v1591 = vperm.slane %v1587, %v1590
  %v1592 = vrot.slane %v1591, 4
  %v1593 = vsel %vm172, %v1592, %v1585
  %v1594 = vrot.slane %v1585, 4
  %v1595 = vsel %vm172, %v1591, %v1594
  %v1596 = vsel %vm172, %v1552, %v1533
  %v1598 = vunpack.c.l.s4 1983009808
  %v1599 = vunpack.c.0.s8 %v1598
  %v1600 = vperm.slane %v1596, %v1599
  %v1601 = vrot.slane %v1553, 4
  %v1602 = vsel %vm172, %v1601, %v1551
  %v1604 = vunpack.c.l.s4 1983009808
  %v1605 = vunpack.c.0.s8 %v1604
  %v1606 = vperm.slane %v1602, %v1605
  %v1607 = vsel %vm172, %v1556, %v1545
  %v1609 = vunpack.c.l.s4 1983009808
  %v1610 = vunpack.c.0.s8 %v1609
  %v1611 = vperm.slane %v1607, %v1610
  %v1612 = vrot.slane %v1557, 4
  %v1613 = vsel %vm172, %v1612, %v1555
  %v1615 = vunpack.c.l.s4 1983009808
  %v1616 = vunpack.c.0.s8 %v1615
  %v1617 = vperm.slane %v1613, %v1616
  %v1618 = vrot.slane %v1606, 4
  %v1619 = vsel %vm172, %v1618, %v1600
  %v1621 = vunpack.c.l.s4 1934713408
  %v1622 = vunpack.c.0.s8 %v1621
  %v1623 = vperm.slane %v1619, %v1622
  %v1624 = vrot.slane %v1617, 4
  %v1625 = vsel %vm172, %v1624, %v1611
  %v1627 = vunpack.c.l.s4 1934713408
  %v1628 = vunpack.c.0.s8 %v1627
  %v1629 = vperm.slane %v1625, %v1628
  %v1630 = vrot.slane %v1629, 4
  %v1631 = vsel %vm172, %v1630, %v1623
  %v1632 = vrot.slane %v1623, 4
  %v1633 = vsel %vm172, %v1629, %v1632
  %1634 = vrot.lane.b32.xlu0 %v1442, 96
  %v1635 = vpop.permute.xlu0 %1634
  %1636 = vrot.lane.b32.xlu0 %v1444, 96
  %v1637 = vpop.permute.xlu0 %1636
  %1638 = vrot.lane.b32.xlu0 %v1449, 96
  %v1639 = vpop.permute.xlu0 %1638
  %1640 = vrot.lane.b32.xlu0 %v1451, 96
  %v1641 = vpop.permute.xlu0 %1640
  %v1646 = vrot.slane %v1635, 4
  %v1647 = vsel %vm172, 0.0, %v1646
  %v1649 = vunpack.c.l.s4 1983009808
  %v1650 = vunpack.c.0.s8 %v1649
  %v1651 = vperm.slane %v1635, %v1650
  %v1653 = vunpack.c.l.s4 1983009808
  %v1654 = vunpack.c.0.s8 %v1653
  %v1655 = vperm.slane %v1647, %v1654
  %v1656 = vrot.slane %v1639, 4
  %v1657 = vsel %vm172, 0.0, %v1656
  %v1659 = vunpack.c.l.s4 1983009808
  %v1660 = vunpack.c.0.s8 %v1659
  %v1661 = vperm.slane %v1639, %v1660
  %v1663 = vunpack.c.l.s4 1983009808
  %v1664 = vunpack.c.0.s8 %v1663
  %v1665 = vperm.slane %v1657, %v1664
  %v1666 = vrot.slane %v1661, 4
  %v1667 = vsel %vm172, %v1666, %v1651
  %v1668 = vrot.slane %v1651, 4
  %v1669 = vsel %vm172, %v1661, %v1668
  %v1671 = vunpack.c.l.s4 1934713408
  %v1672 = vunpack.c.0.s8 %v1671
  %v1673 = vperm.slane %v1667, %v1672
  %v1675 = vunpack.c.l.s4 1934713408
  %v1676 = vunpack.c.0.s8 %v1675
  %v1677 = vperm.slane %v1669, %v1676
  %v1678 = vrot.slane %v1665, 4
  %v1679 = vsel %vm172, %v1678, %v1655
  %v1680 = vrot.slane %v1655, 4
  %v1681 = vsel %vm172, %v1665, %v1680
  %v1683 = vunpack.c.l.s4 1934713408
  %v1684 = vunpack.c.0.s8 %v1683
  %v1685 = vperm.slane %v1679, %v1684
  %v1687 = vunpack.c.l.s4 1934713408
  %v1688 = vunpack.c.0.s8 %v1687
  %v1689 = vperm.slane %v1681, %v1688
  %v1690 = vrot.slane %v1673, 4
  %v1691 = vsel %vm172, 0.0, %v1690
  %v1692 = vrot.slane %v1677, 4
  %v1693 = vsel %vm172, 0.0, %v1692
  %v1694 = vrot.slane %v1685, 4
  %v1695 = vsel %vm172, 0.0, %v1694
  %v1696 = vrot.slane %v1689, 4
  %v1697 = vsel %vm172, 0.0, %v1696
  %v1698 = vrot.slane %v1637, 4
  %v1699 = vsel %vm172, 0.0, %v1698
  %v1701 = vunpack.c.l.s4 1983009808
  %v1702 = vunpack.c.0.s8 %v1701
  %v1703 = vperm.slane %v1637, %v1702
  %v1705 = vunpack.c.l.s4 1983009808
  %v1706 = vunpack.c.0.s8 %v1705
  %v1707 = vperm.slane %v1699, %v1706
  %v1708 = vrot.slane %v1641, 4
  %v1709 = vsel %vm172, 0.0, %v1708
  %v1711 = vunpack.c.l.s4 1983009808
  %v1712 = vunpack.c.0.s8 %v1711
  %v1713 = vperm.slane %v1641, %v1712
  %v1715 = vunpack.c.l.s4 1983009808
  %v1716 = vunpack.c.0.s8 %v1715
  %v1717 = vperm.slane %v1709, %v1716
  %v1718 = vrot.slane %v1713, 4
  %v1719 = vsel %vm172, %v1718, %v1703
  %v1720 = vrot.slane %v1703, 4
  %v1721 = vsel %vm172, %v1713, %v1720
  %v1723 = vunpack.c.l.s4 1934713408
  %v1724 = vunpack.c.0.s8 %v1723
  %v1725 = vperm.slane %v1719, %v1724
  %v1727 = vunpack.c.l.s4 1934713408
  %v1728 = vunpack.c.0.s8 %v1727
  %v1729 = vperm.slane %v1721, %v1728
  %v1730 = vrot.slane %v1717, 4
  %v1731 = vsel %vm172, %v1730, %v1707
  %v1732 = vrot.slane %v1707, 4
  %v1733 = vsel %vm172, %v1717, %v1732
  %v1735 = vunpack.c.l.s4 1934713408
  %v1736 = vunpack.c.0.s8 %v1735
  %v1737 = vperm.slane %v1731, %v1736
  %v1739 = vunpack.c.l.s4 1934713408
  %v1740 = vunpack.c.0.s8 %v1739
  %v1741 = vperm.slane %v1733, %v1740
  %v1742 = vrot.slane %v1725, 4
  %v1743 = vsel %vm172, 0.0, %v1742
  %v1744 = vrot.slane %v1729, 4
  %v1745 = vsel %vm172, 0.0, %v1744
  %v1746 = vrot.slane %v1737, 4
  %v1747 = vsel %vm172, 0.0, %v1746
  %v1748 = vrot.slane %v1741, 4
  %v1749 = vsel %vm172, 0.0, %v1748
  %v1750 = vsel %vm172, %v1692, %v1673
  %v1752 = vunpack.c.l.s4 1983009808
  %v1753 = vunpack.c.0.s8 %v1752
  %v1754 = vperm.slane %v1750, %v1753
  %v1755 = vrot.slane %v1693, 4
  %v1756 = vsel %vm172, %v1755, %v1691
  %v1758 = vunpack.c.l.s4 1983009808
  %v1759 = vunpack.c.0.s8 %v1758
  %v1760 = vperm.slane %v1756, %v1759
  %v1761 = vsel %vm172, %v1696, %v1685
  %v1763 = vunpack.c.l.s4 1983009808
  %v1764 = vunpack.c.0.s8 %v1763
  %v1765 = vperm.slane %v1761, %v1764
  %v1766 = vrot.slane %v1697, 4
  %v1767 = vsel %vm172, %v1766, %v1695
  %v1769 = vunpack.c.l.s4 1983009808
  %v1770 = vunpack.c.0.s8 %v1769
  %v1771 = vperm.slane %v1767, %v1770
  %v1772 = vrot.slane %v1760, 4
  %v1773 = vsel %vm172, %v1772, %v1754
  %v1775 = vunpack.c.l.s4 1934713408
  %v1776 = vunpack.c.0.s8 %v1775
  %v1777 = vperm.slane %v1773, %v1776
  %v1778 = vrot.slane %v1771, 4
  %v1779 = vsel %vm172, %v1778, %v1765
  %v1781 = vunpack.c.l.s4 1934713408
  %v1782 = vunpack.c.0.s8 %v1781
  %v1783 = vperm.slane %v1779, %v1782
  %v1784 = vrot.slane %v1783, 4
  %v1785 = vsel %vm172, %v1784, %v1777
  %v1786 = vrot.slane %v1777, 4
  %v1787 = vsel %vm172, %v1783, %v1786
  %v1788 = vsel %vm172, %v1744, %v1725
  %v1790 = vunpack.c.l.s4 1983009808
  %v1791 = vunpack.c.0.s8 %v1790
  %v1792 = vperm.slane %v1788, %v1791
  %v1793 = vrot.slane %v1745, 4
  %v1794 = vsel %vm172, %v1793, %v1743
  %v1796 = vunpack.c.l.s4 1983009808
  %v1797 = vunpack.c.0.s8 %v1796
  %v1798 = vperm.slane %v1794, %v1797
  %v1799 = vsel %vm172, %v1748, %v1737
  %v1801 = vunpack.c.l.s4 1983009808
  %v1802 = vunpack.c.0.s8 %v1801
  %v1803 = vperm.slane %v1799, %v1802
  %v1804 = vrot.slane %v1749, 4
  %v1805 = vsel %vm172, %v1804, %v1747
  %v1807 = vunpack.c.l.s4 1983009808
  %v1808 = vunpack.c.0.s8 %v1807
  %v1809 = vperm.slane %v1805, %v1808
  %v1810 = vrot.slane %v1798, 4
  %v1811 = vsel %vm172, %v1810, %v1792
  %v1813 = vunpack.c.l.s4 1934713408
  %v1814 = vunpack.c.0.s8 %v1813
  %v1815 = vperm.slane %v1811, %v1814
  %v1816 = vrot.slane %v1809, 4
  %v1817 = vsel %vm172, %v1816, %v1803
  %v1819 = vunpack.c.l.s4 1934713408
  %v1820 = vunpack.c.0.s8 %v1819
  %v1821 = vperm.slane %v1817, %v1820
  %v1822 = vrot.slane %v1821, 4
  %v1823 = vsel %vm172, %v1822, %v1815
  %v1824 = vrot.slane %v1815, 4
  %v1825 = vsel %vm172, %v1821, %v1824
  %1826 = vrot.lane.b32.xlu0 %v1442, 64
  %v1827 = vpop.permute.xlu0 %1826
  %1828 = vrot.lane.b32.xlu0 %v1444, 64
  %v1829 = vpop.permute.xlu0 %1828
  %1830 = vrot.lane.b32.xlu0 %v1449, 64
  %v1831 = vpop.permute.xlu0 %1830
  %1832 = vrot.lane.b32.xlu0 %v1451, 64
  %v1833 = vpop.permute.xlu0 %1832
  %v1838 = vrot.slane %v1827, 4
  %v1839 = vsel %vm172, 0.0, %v1838
  %v1841 = vunpack.c.l.s4 1983009808
  %v1842 = vunpack.c.0.s8 %v1841
  %v1843 = vperm.slane %v1827, %v1842
  %v1845 = vunpack.c.l.s4 1983009808
  %v1846 = vunpack.c.0.s8 %v1845
  %v1847 = vperm.slane %v1839, %v1846
  %v1848 = vrot.slane %v1831, 4
  %v1849 = vsel %vm172, 0.0, %v1848
  %v1851 = vunpack.c.l.s4 1983009808
  %v1852 = vunpack.c.0.s8 %v1851
  %v1853 = vperm.slane %v1831, %v1852
  %v1855 = vunpack.c.l.s4 1983009808
  %v1856 = vunpack.c.0.s8 %v1855
  %v1857 = vperm.slane %v1849, %v1856
  %v1858 = vrot.slane %v1853, 4
  %v1859 = vsel %vm172, %v1858, %v1843
  %v1860 = vrot.slane %v1843, 4
  %v1861 = vsel %vm172, %v1853, %v1860
  %v1863 = vunpack.c.l.s4 1934713408
  %v1864 = vunpack.c.0.s8 %v1863
  %v1865 = vperm.slane %v1859, %v1864
  %v1867 = vunpack.c.l.s4 1934713408
  %v1868 = vunpack.c.0.s8 %v1867
  %v1869 = vperm.slane %v1861, %v1868
  %v1870 = vrot.slane %v1857, 4
  %v1871 = vsel %vm172, %v1870, %v1847
  %v1872 = vrot.slane %v1847, 4
  %v1873 = vsel %vm172, %v1857, %v1872
  %v1875 = vunpack.c.l.s4 1934713408
  %v1876 = vunpack.c.0.s8 %v1875
  %v1877 = vperm.slane %v1871, %v1876
  %v1879 = vunpack.c.l.s4 1934713408
  %v1880 = vunpack.c.0.s8 %v1879
  %v1881 = vperm.slane %v1873, %v1880
  %v1882 = vrot.slane %v1865, 4
  %v1883 = vsel %vm172, 0.0, %v1882
  %v1884 = vrot.slane %v1869, 4
  %v1885 = vsel %vm172, 0.0, %v1884
  %v1886 = vrot.slane %v1877, 4
  %v1887 = vsel %vm172, 0.0, %v1886
  %v1888 = vrot.slane %v1881, 4
  %v1889 = vsel %vm172, 0.0, %v1888
  %v1890 = vrot.slane %v1829, 4
  %v1891 = vsel %vm172, 0.0, %v1890
  %v1893 = vunpack.c.l.s4 1983009808
  %v1894 = vunpack.c.0.s8 %v1893
  %v1895 = vperm.slane %v1829, %v1894
  %v1897 = vunpack.c.l.s4 1983009808
  %v1898 = vunpack.c.0.s8 %v1897
  %v1899 = vperm.slane %v1891, %v1898
  %v1900 = vrot.slane %v1833, 4
  %v1901 = vsel %vm172, 0.0, %v1900
  %v1903 = vunpack.c.l.s4 1983009808
  %v1904 = vunpack.c.0.s8 %v1903
  %v1905 = vperm.slane %v1833, %v1904
  %v1907 = vunpack.c.l.s4 1983009808
  %v1908 = vunpack.c.0.s8 %v1907
  %v1909 = vperm.slane %v1901, %v1908
  %v1910 = vrot.slane %v1905, 4
  %v1911 = vsel %vm172, %v1910, %v1895
  %v1912 = vrot.slane %v1895, 4
  %v1913 = vsel %vm172, %v1905, %v1912
  %v1915 = vunpack.c.l.s4 1934713408
  %v1916 = vunpack.c.0.s8 %v1915
  %v1917 = vperm.slane %v1911, %v1916
  %v1919 = vunpack.c.l.s4 1934713408
  %v1920 = vunpack.c.0.s8 %v1919
  %v1921 = vperm.slane %v1913, %v1920
  %v1922 = vrot.slane %v1909, 4
  %v1923 = vsel %vm172, %v1922, %v1899
  %v1924 = vrot.slane %v1899, 4
  %v1925 = vsel %vm172, %v1909, %v1924
  %v1927 = vunpack.c.l.s4 1934713408
  %v1928 = vunpack.c.0.s8 %v1927
  %v1929 = vperm.slane %v1923, %v1928
  %v1931 = vunpack.c.l.s4 1934713408
  %v1932 = vunpack.c.0.s8 %v1931
  %v1933 = vperm.slane %v1925, %v1932
  %v1934 = vrot.slane %v1917, 4
  %v1935 = vsel %vm172, 0.0, %v1934
  %v1936 = vrot.slane %v1921, 4
  %v1937 = vsel %vm172, 0.0, %v1936
  %v1938 = vrot.slane %v1929, 4
  %v1939 = vsel %vm172, 0.0, %v1938
  %v1940 = vrot.slane %v1933, 4
  %v1941 = vsel %vm172, 0.0, %v1940
  %v1942 = vsel %vm172, %v1884, %v1865
  %v1944 = vunpack.c.l.s4 1983009808
  %v1945 = vunpack.c.0.s8 %v1944
  %v1946 = vperm.slane %v1942, %v1945
  %v1947 = vrot.slane %v1885, 4
  %v1948 = vsel %vm172, %v1947, %v1883
  %v1950 = vunpack.c.l.s4 1983009808
  %v1951 = vunpack.c.0.s8 %v1950
  %v1952 = vperm.slane %v1948, %v1951
  %v1953 = vsel %vm172, %v1888, %v1877
  %v1955 = vunpack.c.l.s4 1983009808
  %v1956 = vunpack.c.0.s8 %v1955
  %v1957 = vperm.slane %v1953, %v1956
  %v1958 = vrot.slane %v1889, 4
  %v1959 = vsel %vm172, %v1958, %v1887
  %v1961 = vunpack.c.l.s4 1983009808
  %v1962 = vunpack.c.0.s8 %v1961
  %v1963 = vperm.slane %v1959, %v1962
  %v1964 = vrot.slane %v1952, 4
  %v1965 = vsel %vm172, %v1964, %v1946
  %v1967 = vunpack.c.l.s4 1934713408
  %v1968 = vunpack.c.0.s8 %v1967
  %v1969 = vperm.slane %v1965, %v1968
  %v1970 = vrot.slane %v1963, 4
  %v1971 = vsel %vm172, %v1970, %v1957
  %v1973 = vunpack.c.l.s4 1934713408
  %v1974 = vunpack.c.0.s8 %v1973
  %v1975 = vperm.slane %v1971, %v1974
  %v1976 = vrot.slane %v1975, 4
  %v1977 = vsel %vm172, %v1976, %v1969
  %v1978 = vrot.slane %v1969, 4
  %v1979 = vsel %vm172, %v1975, %v1978
  %v1980 = vsel %vm172, %v1936, %v1917
  %v1982 = vunpack.c.l.s4 1983009808
  %v1983 = vunpack.c.0.s8 %v1982
  %v1984 = vperm.slane %v1980, %v1983
  %v1985 = vrot.slane %v1937, 4
  %v1986 = vsel %vm172, %v1985, %v1935
  %v1988 = vunpack.c.l.s4 1983009808
  %v1989 = vunpack.c.0.s8 %v1988
  %v1990 = vperm.slane %v1986, %v1989
  %v1991 = vsel %vm172, %v1940, %v1929
  %v1993 = vunpack.c.l.s4 1983009808
  %v1994 = vunpack.c.0.s8 %v1993
  %v1995 = vperm.slane %v1991, %v1994
  %v1996 = vrot.slane %v1941, 4
  %v1997 = vsel %vm172, %v1996, %v1939
  %v1999 = vunpack.c.l.s4 1983009808
  %v2000 = vunpack.c.0.s8 %v1999
  %v2001 = vperm.slane %v1997, %v2000
  %v2002 = vrot.slane %v1990, 4
  %v2003 = vsel %vm172, %v2002, %v1984
  %v2005 = vunpack.c.l.s4 1934713408
  %v2006 = vunpack.c.0.s8 %v2005
  %v2007 = vperm.slane %v2003, %v2006
  %v2008 = vrot.slane %v2001, 4
  %v2009 = vsel %vm172, %v2008, %v1995
  %v2011 = vunpack.c.l.s4 1934713408
  %v2012 = vunpack.c.0.s8 %v2011
  %v2013 = vperm.slane %v2009, %v2012
  %v2014 = vrot.slane %v2013, 4
  %v2015 = vsel %vm172, %v2014, %v2007
  %v2016 = vrot.slane %v2007, 4
  %v2017 = vsel %vm172, %v2013, %v2016
  %v2018 = vpack.c.bf16 %v1593, %v1593
  %v2019 = vpack.c.bf16 %v1631, %v1631
  %v2020 = vpack.c.bf16 %v1595, %v1595
  %v2021 = vpack.c.bf16 %v1633, %v1633
  %v2022 = vpack.c.bf16 %v1785, %v1785
  %v2023 = vpack.c.bf16 %v1823, %v1823
  %v2024 = vpack.c.bf16 %v1787, %v1787
  %v2025 = vpack.c.bf16 %v1825, %v1825
  %v2028 = vunpack.c.l.b16 %v2018
  %v2029 = vunpack.c.l.b16 %v2019
  %v2030 = vpack.c.b16 %v2029, %v2028
  %v2033 = vunpack.c.l.b16 %v2022
  %v2034 = vunpack.c.l.b16 %v2023
  %v2035 = vpack.c.b16 %v2034, %v2033
  %v2037 = vsel %vm754, %v2030, 0
  %v2040 = vsel %vm754, %v2035, 0
  %2042 = vmatpush.bf16.xpose.msra.mxu0 0
  %2043 = vmatpush.bf16.xpose.msra.mxu0 0
  %2044 = vmatpush.bf16.xpose.msra.mxu0 0
  %2045 = vmatpush.bf16.xpose.msra.mxu0 0
  %2046 = vmatpush.bf16.xpose.msra.mxu0 0
  %2047 = vmatpush.bf16.xpose.msra.mxu0 0
  %2048 = vmatpush.bf16.xpose.msra.mxu0 0
  %2049 = vmatpush.bf16.xpose.msra.mxu0 %v2040
  %2050 = vmatmul.bf16.gmra.mxu0 %v2037
  %v2051 = vpop.f32.mrf.mxu0
  %v2052 = vadd.f32 0.0, %v2051
  %v2053 = vpop.f32.mrf.mxu0
  %v2054 = vadd.f32 0.0, %v2053
  %2055 = vdwg.mxu0
  %v2058 = vunpack.c.l.b16 %v2020
  %v2059 = vunpack.c.l.b16 %v2021
  %v2060 = vpack.c.b16 %v2059, %v2058
  %v2063 = vunpack.c.l.b16 %v2024
  %v2064 = vunpack.c.l.b16 %v2025
  %v2065 = vpack.c.b16 %v2064, %v2063
  %v2067 = vsel %vm754, %v2060, 0
  %v2070 = vsel %vm754, %v2065, 0
  %2072 = vmatpush.bf16.xpose.msra.mxu0 0
  %2073 = vmatpush.bf16.xpose.msra.mxu0 0
  %2074 = vmatpush.bf16.xpose.msra.mxu0 0
  %2075 = vmatpush.bf16.xpose.msra.mxu0 0
  %2076 = vmatpush.bf16.xpose.msra.mxu0 0
  %2077 = vmatpush.bf16.xpose.msra.mxu0 0
  %2078 = vmatpush.bf16.xpose.msra.mxu0 0
  %2079 = vmatpush.bf16.xpose.msra.mxu0 %v2070
  %2080 = vmatmul.bf16.gmra.mxu0 %v2067
  %v2081 = vpop.f32.mrf.mxu0
  %v2082 = vadd.f32 0.0, %v2081
  %v2083 = vpop.f32.mrf.mxu0
  %v2084 = vadd.f32 0.0, %v2083
  %2085 = vdwg.mxu0
  %v2086 = vmul.f32 %v2052, 0.25
  %v2087 = vmul.f32 %v2054, 0.25
  %v2088 = vmul.f32 %v2082, 0.25
  %v2089 = vmul.f32 %v2084, 0.25
  %v2090 = vadd.f32 %v2086, %v59
  %v2091 = vadd.f32 %v2087, %v60
  %v2092 = vadd.f32 %v2088, %v59
  %v2093 = vadd.f32 %v2089, %v60
  %v2094 = vsel %vm754, %v2090, -inf
  %2095 = vmax.xlane.f32.xlu0 %v2094
  %v2096 = vpop.xlane.xlu0 %2095
  %v2097 = vsel %vm754, %v2091, -inf
  %2098 = vmax.xlane.f32.xlu0 %v2097
  %v2099 = vpop.xlane.xlu0 %2098
  %v2100 = vsel %vm754, %v2092, -inf
  %2101 = vmax.xlane.f32.xlu0 %v2100
  %v2102 = vpop.xlane.xlu0 %2101
  %v2103 = vsel %vm754, %v2093, -inf
  %2104 = vmax.xlane.f32.xlu0 %v2103
  %v2105 = vpop.xlane.xlu0 %2104
  %v2106 = vsub.f32 %v2090, %v2096
  %v2107 = vsub.f32 %v2091, %v2099
  %v2108 = vsub.f32 %v2092, %v2102
  %v2109 = vsub.f32 %v2093, %v2105
  %v2110 = vmul.f32 %v2106, 1.442695
  %v2111 = vpow.pop %v2110
  %v2112 = vmul.f32 %v2107, 1.442695
  %v2113 = vpow.pop %v2112
  %v2114 = vmul.f32 %v2108, 1.442695
  %v2115 = vpow.pop %v2114
  %v2116 = vmul.f32 %v2109, 1.442695
  %v2117 = vpow.pop %v2116
  %v2118 = vsel %vm754, %v2111, 0.0
  %2119 = vadd.xlane.f32.xlu0 %v2118
  %v2120 = vpop.xlane.xlu0 %2119
  %v2121 = vsel %vm754, %v2113, 0.0
  %2122 = vadd.xlane.f32.xlu0 %v2121
  %v2123 = vpop.xlane.xlu0 %2122
  %v2124 = vsel %vm754, %v2115, 0.0
  %2125 = vadd.xlane.f32.xlu0 %v2124
  %v2126 = vpop.xlane.xlu0 %2125
  %v2127 = vsel %vm754, %v2117, 0.0
  %2128 = vadd.xlane.f32.xlu0 %v2127
  %v2129 = vpop.xlane.xlu0 %2128
  %v2130 = vrcp.pop %v2120
  %v2131 = vrcp.pop %v2123
  %v2132 = vrcp.pop %v2126
  %v2133 = vrcp.pop %v2129
  %v2134 = vmul.f32 %v2111, %v2130
  %v2135 = vmul.f32 %v2113, %v2131
  %v2136 = vmul.f32 %v2115, %v2132
  %v2137 = vmul.f32 %v2117, %v2133
  %v2138 = vpack.c.bf16 %v2134, %v2134
  %v2139 = vpack.c.bf16 %v2135, %v2135
  %v2140 = vpack.c.bf16 %v2136, %v2136
  %v2141 = vpack.c.bf16 %v2137, %v2137
  %v2142 = vpack.c.bf16 %v1977, %v1977
  %v2143 = vpack.c.bf16 %v2015, %v2015
  %v2144 = vpack.c.bf16 %v1979, %v1979
  %v2145 = vpack.c.bf16 %v2017, %v2017
  %v2148 = vunpack.c.l.b16 %v2138
  %v2149 = vunpack.c.l.b16 %v2139
  %v2150 = vpack.c.b16 %v2149, %v2148
  %v2153 = vunpack.c.l.b16 %v2142
  %v2154 = vunpack.c.l.b16 %v2143
  %v2155 = vpack.c.b16 %v2154, %v2153
  %v2158 = vsel %vm754, %v2150, 0
  %2160 = vmatpush.bf16.msra.mxu0 0
  %2161 = vmatpush.bf16.msra.mxu0 0
  %2162 = vmatpush.bf16.msra.mxu0 0
  %2163 = vmatpush.bf16.msra.mxu0 0
  %2164 = vmatpush.bf16.msra.mxu0 0
  %2165 = vmatpush.bf16.msra.mxu0 0
  %2166 = vmatpush.bf16.msra.mxu0 0
  %2167 = vmatpush.bf16.msra.mxu0 %v2155
  %2168 = vmatmul.bf16.gmra.mxu0 %v2158
  %v2169 = vpop.f32.mrf.mxu0
  %v2170 = vadd.f32 0.0, %v2169
  %v2171 = vpop.f32.mrf.mxu0
  %v2172 = vadd.f32 0.0, %v2171
  %2173 = vdwg.mxu0
  %v2176 = vunpack.c.l.b16 %v2140
  %v2177 = vunpack.c.l.b16 %v2141
  %v2178 = vpack.c.b16 %v2177, %v2176
  %v2181 = vunpack.c.l.b16 %v2144
  %v2182 = vunpack.c.l.b16 %v2145
  %v2183 = vpack.c.b16 %v2182, %v2181
  %v2186 = vsel %vm754, %v2178, 0
  %2188 = vmatpush.bf16.msra.mxu0 0
  %2189 = vmatpush.bf16.msra.mxu0 0
  %2190 = vmatpush.bf16.msra.mxu0 0
  %2191 = vmatpush.bf16.msra.mxu0 0
  %2192 = vmatpush.bf16.msra.mxu0 0
  %2193 = vmatpush.bf16.msra.mxu0 0
  %2194 = vmatpush.bf16.msra.mxu0 0
  %2195 = vmatpush.bf16.msra.mxu0 %v2183
  %2196 = vmatmul.bf16.gmra.mxu0 %v2186
  %v2197 = vpop.f32.mrf.mxu0
  %v2198 = vadd.f32 0.0, %v2197
  %v2199 = vpop.f32.mrf.mxu0
  %v2200 = vadd.f32 0.0, %v2199
  %2201 = vdwg.mxu0
  %v2202 = vrot.slane %v2170, 4
  %v2203 = vsel %vm172, 0.0, %v2202
  %v2205 = vunpack.c.l.s4 1983009808
  %v2206 = vunpack.c.0.s8 %v2205
  %v2207 = vperm.slane %v2170, %v2206
  %v2209 = vunpack.c.l.s4 1983009808
  %v2210 = vunpack.c.0.s8 %v2209
  %v2211 = vperm.slane %v2203, %v2210
  %v2212 = vrot.slane %v2198, 4
  %v2213 = vsel %vm172, 0.0, %v2212
  %v2215 = vunpack.c.l.s4 1983009808
  %v2216 = vunpack.c.0.s8 %v2215
  %v2217 = vperm.slane %v2198, %v2216
  %v2219 = vunpack.c.l.s4 1983009808
  %v2220 = vunpack.c.0.s8 %v2219
  %v2221 = vperm.slane %v2213, %v2220
  %v2222 = vrot.slane %v2217, 4
  %v2223 = vsel %vm172, %v2222, %v2207
  %v2224 = vrot.slane %v2207, 4
  %v2225 = vsel %vm172, %v2217, %v2224
  %v2227 = vunpack.c.l.s4 1934713408
  %v2228 = vunpack.c.0.s8 %v2227
  %v2229 = vperm.slane %v2223, %v2228
  %v2231 = vunpack.c.l.s4 1934713408
  %v2232 = vunpack.c.0.s8 %v2231
  %v2233 = vperm.slane %v2225, %v2232
  %v2234 = vrot.slane %v2221, 4
  %v2235 = vsel %vm172, %v2234, %v2211
  %v2236 = vrot.slane %v2211, 4
  %v2237 = vsel %vm172, %v2221, %v2236
  %v2239 = vunpack.c.l.s4 1934713408
  %v2240 = vunpack.c.0.s8 %v2239
  %v2241 = vperm.slane %v2235, %v2240
  %v2243 = vunpack.c.l.s4 1934713408
  %v2244 = vunpack.c.0.s8 %v2243
  %v2245 = vperm.slane %v2237, %v2244
  %v2246 = vrot.slane %v2229, 4
  %v2247 = vsel %vm172, 0.0, %v2246
  %v2248 = vrot.slane %v2233, 4
  %v2249 = vsel %vm172, 0.0, %v2248
  %v2250 = vrot.slane %v2241, 4
  %v2251 = vsel %vm172, 0.0, %v2250
  %v2252 = vrot.slane %v2245, 4
  %v2253 = vsel %vm172, 0.0, %v2252
  %v2254 = vrot.slane %v2172, 4
  %v2255 = vsel %vm172, 0.0, %v2254
  %v2257 = vunpack.c.l.s4 1983009808
  %v2258 = vunpack.c.0.s8 %v2257
  %v2259 = vperm.slane %v2172, %v2258
  %v2261 = vunpack.c.l.s4 1983009808
  %v2262 = vunpack.c.0.s8 %v2261
  %v2263 = vperm.slane %v2255, %v2262
  %v2264 = vrot.slane %v2200, 4
  %v2265 = vsel %vm172, 0.0, %v2264
  %v2267 = vunpack.c.l.s4 1983009808
  %v2268 = vunpack.c.0.s8 %v2267
  %v2269 = vperm.slane %v2200, %v2268
  %v2271 = vunpack.c.l.s4 1983009808
  %v2272 = vunpack.c.0.s8 %v2271
  %v2273 = vperm.slane %v2265, %v2272
  %v2274 = vrot.slane %v2269, 4
  %v2275 = vsel %vm172, %v2274, %v2259
  %v2276 = vrot.slane %v2259, 4
  %v2277 = vsel %vm172, %v2269, %v2276
  %v2279 = vunpack.c.l.s4 1934713408
  %v2280 = vunpack.c.0.s8 %v2279
  %v2281 = vperm.slane %v2275, %v2280
  %v2283 = vunpack.c.l.s4 1934713408
  %v2284 = vunpack.c.0.s8 %v2283
  %v2285 = vperm.slane %v2277, %v2284
  %v2286 = vrot.slane %v2273, 4
  %v2287 = vsel %vm172, %v2286, %v2263
  %v2288 = vrot.slane %v2263, 4
  %v2289 = vsel %vm172, %v2273, %v2288
  %v2291 = vunpack.c.l.s4 1934713408
  %v2292 = vunpack.c.0.s8 %v2291
  %v2293 = vperm.slane %v2287, %v2292
  %v2295 = vunpack.c.l.s4 1934713408
  %v2296 = vunpack.c.0.s8 %v2295
  %v2297 = vperm.slane %v2289, %v2296
  %v2298 = vrot.slane %v2281, 4
  %v2299 = vsel %vm172, 0.0, %v2298
  %v2300 = vrot.slane %v2285, 4
  %v2301 = vsel %vm172, 0.0, %v2300
  %v2302 = vrot.slane %v2293, 4
  %v2303 = vsel %vm172, 0.0, %v2302
  %v2304 = vrot.slane %v2297, 4
  %v2305 = vsel %vm172, 0.0, %v2304
  %v2306 = vsel %vm172, %v2248, %v2229
  %v2308 = vunpack.c.l.s4 1983009808
  %v2309 = vunpack.c.0.s8 %v2308
  %v2310 = vperm.slane %v2306, %v2309
  %v2311 = vrot.slane %v2249, 4
  %v2312 = vsel %vm172, %v2311, %v2247
  %v2314 = vunpack.c.l.s4 1983009808
  %v2315 = vunpack.c.0.s8 %v2314
  %v2316 = vperm.slane %v2312, %v2315
  %v2317 = vsel %vm172, %v2252, %v2241
  %v2319 = vunpack.c.l.s4 1983009808
  %v2320 = vunpack.c.0.s8 %v2319
  %v2321 = vperm.slane %v2317, %v2320
  %v2322 = vrot.slane %v2253, 4
  %v2323 = vsel %vm172, %v2322, %v2251
  %v2325 = vunpack.c.l.s4 1983009808
  %v2326 = vunpack.c.0.s8 %v2325
  %v2327 = vperm.slane %v2323, %v2326
  %v2328 = vrot.slane %v2316, 4
  %v2329 = vsel %vm172, %v2328, %v2310
  %v2331 = vunpack.c.l.s4 1934713408
  %v2332 = vunpack.c.0.s8 %v2331
  %v2333 = vperm.slane %v2329, %v2332
  %v2334 = vrot.slane %v2327, 4
  %v2335 = vsel %vm172, %v2334, %v2321
  %v2337 = vunpack.c.l.s4 1934713408
  %v2338 = vunpack.c.0.s8 %v2337
  %v2339 = vperm.slane %v2335, %v2338
  %v2340 = vrot.slane %v2339, 4
  %v2341 = vsel %vm172, %v2340, %v2333
  %v2342 = vrot.slane %v2333, 4
  %v2343 = vsel %vm172, %v2339, %v2342
  %v2344 = vsel %vm172, %v2300, %v2281
  %v2346 = vunpack.c.l.s4 1983009808
  %v2347 = vunpack.c.0.s8 %v2346
  %v2348 = vperm.slane %v2344, %v2347
  %v2349 = vrot.slane %v2301, 4
  %v2350 = vsel %vm172, %v2349, %v2299
  %v2352 = vunpack.c.l.s4 1983009808
  %v2353 = vunpack.c.0.s8 %v2352
  %v2354 = vperm.slane %v2350, %v2353
  %v2355 = vsel %vm172, %v2304, %v2293
  %v2357 = vunpack.c.l.s4 1983009808
  %v2358 = vunpack.c.0.s8 %v2357
  %v2359 = vperm.slane %v2355, %v2358
  %v2360 = vrot.slane %v2305, 4
  %v2361 = vsel %vm172, %v2360, %v2303
  %v2363 = vunpack.c.l.s4 1983009808
  %v2364 = vunpack.c.0.s8 %v2363
  %v2365 = vperm.slane %v2361, %v2364
  %v2366 = vrot.slane %v2354, 4
  %v2367 = vsel %vm172, %v2366, %v2348
  %v2369 = vunpack.c.l.s4 1934713408
  %v2370 = vunpack.c.0.s8 %v2369
  %v2371 = vperm.slane %v2367, %v2370
  %v2372 = vrot.slane %v2365, 4
  %v2373 = vsel %vm172, %v2372, %v2359
  %v2375 = vunpack.c.l.s4 1934713408
  %v2376 = vunpack.c.0.s8 %v2375
  %v2377 = vperm.slane %v2373, %v2376
  %v2378 = vrot.slane %v2377, 4
  %v2379 = vsel %vm172, %v2378, %v2371
  %v2380 = vrot.slane %v2371, 4
  %v2381 = vsel %vm172, %v2377, %v2380
  %2384 = vrot.lane.b32.xlu0 %v2343, 16
  %v2385 = vpop.permute.xlu0 %2384
  %2386 = vrot.lane.b32.xlu0 %v2381, 16
  %v2387 = vpop.permute.xlu0 %2386
  %v2390 = vsel %vm754, %v2341, %v2385
  %v2391 = vsel %vm754, %v2379, %v2387
  %v2392 = vpack.c.bf16 %v2391, %v2390
  %s2393 = scalar_lea.vmem %s6, 16
  %v2394 = vld [vmem:[%s2393] sm:$0xf]
  %v2395 = vld [vmem:[%s2393 + $0x4] sm:$0xf]
  %v2396 = vld [vmem:[%s2393 + $0x8] sm:$0xf]
  %v2397 = vld [vmem:[%s2393 + $0xc] sm:$0xf]
  %s2398 = scalar_lea.vmem %s7, 1
  %v2399 = vld [vmem:[%s2398] sm:$0x1]
  %v2401 = vperm.slane %v2399, 0
  %v2407 = vunpack.c.l.b16 %v2394
  %v2408 = vunpack.c.l.b16 %v2395
  %v2409 = vunpack.c.l.b16 %v2396
  %v2410 = vunpack.c.l.b16 %v2397
  %v2411 = vpack.c.b16 %v2408, %v2407
  %v2412 = vpack.c.b16 %v2410, %v2409
  %v2416 = vsel %vm63, %v2392, 0
  %2418 = vmatpush.bf16.msra.mxu0 0
  %2419 = vmatpush.bf16.msra.mxu0 0
  %2420 = vmatpush.bf16.msra.mxu0 0
  %2421 = vmatpush.bf16.msra.mxu0 0
  %2422 = vmatpush.bf16.msra.mxu0 0
  %2423 = vmatpush.bf16.msra.mxu0 0
  %2424 = vmatpush.bf16.msra.mxu0 %v2412
  %2425 = vmatpush.bf16.msra.mxu0 %v2411
  %2426 = vmatmul.bf16.gmra.mxu0 %v2416
  %v2427 = vpop.f32.mrf.mxu0
  %v2428 = vadd.f32 %v2401, %v2427
  %v2429 = vpop.f32.mrf.mxu0
  %v2430 = vadd.f32 %v2401, %v2429
  %2431 = vdwg.mxu0
  %v2432 = vadd.f32 %v1346, %v2428
  %v2433 = vadd.f32 %v1347, %v2430
  %s2434 = scalar_lea.vmem %s8, 1
  %v2435 = vld [vmem:[%s2434] sm:$0x1]
  %s2436 = scalar_lea.vmem %s9, 1
  %v2437 = vld [vmem:[%s2436] sm:$0x1]
  %v2438 = vsel %vm63, %v2432, 0.0
  %2439 = vadd.xlane.f32.xlu0 %v2438
  %v2440 = vpop.xlane.xlu0 %2439
  %v2441 = vsel %vm63, %v2433, 0.0
  %2442 = vadd.xlane.f32.xlu0 %v2441
  %v2443 = vpop.xlane.xlu0 %2442
  %v2444 = vmul.f32 %v2440, %v76
  %v2445 = vmul.f32 %v2443, %v76
  %v2446 = vsub.f32 %v2432, %v2444
  %v2447 = vsub.f32 %v2433, %v2445
  %v2448 = vmul.f32 %v2446, %v2446
  %v2449 = vmul.f32 %v2447, %v2447
  %v2450 = vsel %vm63, %v2448, 0.0
  %2451 = vadd.xlane.f32.xlu0 %v2450
  %v2452 = vpop.xlane.xlu0 %2451
  %v2453 = vsel %vm63, %v2449, 0.0
  %2454 = vadd.xlane.f32.xlu0 %v2453
  %v2455 = vpop.xlane.xlu0 %2454
  %v2456 = vmul.f32 %v2452, %v76
  %v2457 = vmul.f32 %v2455, %v76
  %v2458 = vadd.f32 %v2456, 1e-05
  %v2459 = vadd.f32 %v2457, 1e-05
  %v2460 = vrsqrt.pop %v2458
  %v2461 = vmul.f32 %v2460, %v2458
  %v2462 = vmul.f32 %v2461, %v2460
  %v2463 = vmul.f32 0.5, %v2462
  %v2464 = vsub.f32 1.5, %v2463
  %v2465 = vmul.f32 %v2460, %v2464
  %vm2466 = vweird.f32 %v2458
  %vm2467 = vweird.f32 %v2460
  %vm2468 = vmor %vm2466, %vm2467
  %v2469 = vsel %vm2468, %v2460, %v2465
  %v2470 = vrsqrt.pop %v2459
  %v2471 = vmul.f32 %v2470, %v2459
  %v2472 = vmul.f32 %v2471, %v2470
  %v2473 = vmul.f32 0.5, %v2472
  %v2474 = vsub.f32 1.5, %v2473
  %v2475 = vmul.f32 %v2470, %v2474
  %vm2476 = vweird.f32 %v2459
  %vm2477 = vweird.f32 %v2470
  %vm2478 = vmor %vm2476, %vm2477
  %v2479 = vsel %vm2478, %v2470, %v2475
  %v2480 = vmul.f32 %v2446, %v2469
  %v2481 = vmul.f32 %v2447, %v2479
  %v2483 = vperm.slane %v2435, 0
  %v2485 = vmul.f32 %v2480, %v2483
  %v2486 = vmul.f32 %v2481, %v2483
  %v2488 = vperm.slane %v2437, 0
  %v2490 = vadd.f32 %v2485, %v2488
  %v2491 = vadd.f32 %v2486, %v2488
  %v2492 = vpack.c.bf16 %v2491, %v2490
  %s2493 = scalar_lea.vmem %s10, 16
  %v2494 = vld [vmem:[%s2493] sm:$0xf]
  %v2495 = vld [vmem:[%s2493 + $0x4] sm:$0xf]
  %v2496 = vld [vmem:[%s2493 + $0x8] sm:$0xf]
  %v2497 = vld [vmem:[%s2493 + $0xc] sm:$0xf]
  %s2498 = scalar_lea.vmem %s11, 1
  %v2499 = vld [vmem:[%s2498] sm:$0x1]
  %v2501 = vperm.slane %v2499, 0
  %v2507 = vunpack.c.l.b16 %v2494
  %v2508 = vunpack.c.l.b16 %v2495
  %v2509 = vunpack.c.l.b16 %v2496
  %v2510 = vunpack.c.l.b16 %v2497
  %v2511 = vpack.c.b16 %v2508, %v2507
  %v2512 = vpack.c.b16 %v2510, %v2509
  %v2516 = vsel %vm63, %v2492, 0
  %2518 = vmatpush.bf16.msra.mxu0 0
  %2519 = vmatpush.bf16.msra.mxu0 0
  %2520 = vmatpush.bf16.msra.mxu0 0
  %2521 = vmatpush.bf16.msra.mxu0 0
  %2522 = vmatpush.bf16.msra.mxu0 0
  %2523 = vmatpush.bf16.msra.mxu0 0
  %2524 = vmatpush.bf16.msra.mxu0 %v2512
  %2525 = vmatpush.bf16.msra.mxu0 %v2511
  %2526 = vmatmul.bf16.gmra.mxu0 %v2516
  %v2527 = vpop.f32.mrf.mxu0
  %v2528 = vadd.f32 %v2501, %v2527
  %v2529 = vpop.f32.mrf.mxu0
  %v2530 = vadd.f32 %v2501, %v2529
  %2531 = vdwg.mxu0
  %v2532 = vmul.f32 %v2528, 0.5
  %v2533 = vmul.f32 %v2530, 0.5
  %v2534 = vmul.f32 %v2528, 0.044715
  %v2535 = vmul.f32 %v2530, 0.044715
  %v2536 = vmul.f32 %v2534, %v2528
  %v2537 = vmul.f32 %v2535, %v2530
  %v2538 = vmul.f32 %v2536, %v2528
  %v2539 = vmul.f32 %v2537, %v2530
  %v2540 = vadd.f32 %v2528, %v2538
  %v2541 = vadd.f32 %v2530, %v2539
  %v2542 = vmul.f32 %v2540, 0.7978846
  %v2543 = vmul.f32 %v2541, 0.7978846
  %v2544 = vtanh.pop %v2542
  %v2545 = vtanh.pop %v2543
  %v2546 = vadd.f32 %v2544, 1.0
  %v2547 = vadd.f32 %v2545, 1.0
  %v2548 = vmul.f32 %v2532, %v2546
  %v2549 = vmul.f32 %v2533, %v2547
  %v2550 = vpack.c.bf16 %v2549, %v2548
  %s2551 = scalar_lea.vmem %s12, 64
  %v2552 = vld [vmem:[%s2551] sm:$0xf]
  %v2553 = vld [vmem:[%s2551 + $0x4] sm:$0xf]
  %v2554 = vld [vmem:[%s2551 + $0x8] sm:$0xf]
  %v2555 = vld [vmem:[%s2551 + $0xc] sm:$0xf]
  %v2556 = vld [vmem:[%s2551 + $0x10] sm:$0xf]
  %v2557 = vld [vmem:[%s2551 + $0x14] sm:$0xf]
  %v2558 = vld [vmem:[%s2551 + $0x18] sm:$0xf]
  %v2559 = vld [vmem:[%s2551 + $0x1c] sm:$0xf]
  %v2560 = vld [vmem:[%s2551 + $0x20] sm:$0xf]
  %v2561 = vld [vmem:[%s2551 + $0x24] sm:$0xf]
  %v2562 = vld [vmem:[%s2551 + $0x28] sm:$0xf]
  %v2563 = vld [vmem:[%s2551 + $0x2c] sm:$0xf]
  %v2564 = vld [vmem:[%s2551 + $0x30] sm:$0xf]
  %v2565 = vld [vmem:[%s2551 + $0x34] sm:$0xf]
  %v2566 = vld [vmem:[%s2551 + $0x38] sm:$0xf]
  %v2567 = vld [vmem:[%s2551 + $0x3c] sm:$0xf]
  %s2568 = scalar_lea.vmem %s13, 1
  %v2569 = vld [vmem:[%s2568] sm:$0x1]
  %v2571 = vperm.slane %v2569, 0
  %v2589 = vunpack.c.l.b16 %v2552
  %v2590 = vunpack.c.l.b16 %v2553
  %v2591 = vunpack.c.l.b16 %v2554
  %v2592 = vunpack.c.l.b16 %v2555
  %v2593 = vunpack.c.l.b16 %v2556
  %v2594 = vunpack.c.l.b16 %v2557
  %v2595 = vunpack.c.l.b16 %v2558
  %v2596 = vunpack.c.l.b16 %v2559
  %v2597 = vunpack.c.l.b16 %v2560
  %v2598 = vunpack.c.l.b16 %v2561
  %v2599 = vunpack.c.l.b16 %v2562
  %v2600 = vunpack.c.l.b16 %v2563
  %v2601 = vunpack.c.l.b16 %v2564
  %v2602 = vunpack.c.l.b16 %v2565
  %v2603 = vunpack.c.l.b16 %v2566
  %v2604 = vunpack.c.l.b16 %v2567
  %v2605 = vpack.c.b16 %v2590, %v2589
  %v2606 = vpack.c.b16 %v2592, %v2591
  %v2607 = vpack.c.b16 %v2594, %v2593
  %v2608 = vpack.c.b16 %v2596, %v2595
  %v2609 = vpack.c.b16 %v2598, %v2597
  %v2610 = vpack.c.b16 %v2600, %v2599
  %v2611 = vpack.c.b16 %v2602, %v2601
  %v2612 = vpack.c.b16 %v2604, %v2603
  %2621 = vmatpush.bf16.msra.mxu0 %v2612
  %2622 = vmatpush.bf16.msra.mxu0 %v2611
  %2623 = vmatpush.bf16.msra.mxu0 %v2610
  %2624 = vmatpush.bf16.msra.mxu0 %v2609
  %2625 = vmatpush.bf16.msra.mxu0 %v2608
  %2626 = vmatpush.bf16.msra.mxu0 %v2607
  %2627 = vmatpush.bf16.msra.mxu0 %v2606
  %2628 = vmatpush.bf16.msra.mxu0 %v2605
  %2629 = vmatmul.bf16.gmra.mxu0 %v2550
  %v2630 = vpop.f32.mrf.mxu0
  %v2631 = vadd.f32 %v2571, %v2630
  %v2632 = vpop.f32.mrf.mxu0
  %v2633 = vadd.f32 %v2571, %v2632
  %2634 = vdwg.mxu0
  %v2635 = vadd.f32 %v2432, %v2631
  %v2636 = vadd.f32 %v2433, %v2633
  %v2637 = vld [vmem:[%s14] sm:$0x1]
  %v2638 = vld [vmem:[%s15] sm:$0x1]
  %v2639 = vsel %vm63, %v2635, 0.0
  %2640 = vadd.xlane.f32.xlu0 %v2639
  %v2641 = vpop.xlane.xlu0 %2640
  %v2642 = vsel %vm63, %v2636, 0.0
  %2643 = vadd.xlane.f32.xlu0 %v2642
  %v2644 = vpop.xlane.xlu0 %2643
  %v2645 = vmul.f32 %v2641, %v76
  %v2646 = vmul.f32 %v2644, %v76
  %v2647 = vsub.f32 %v2635, %v2645
  %v2648 = vsub.f32 %v2636, %v2646
  %v2649 = vmul.f32 %v2647, %v2647
  %v2650 = vmul.f32 %v2648, %v2648
  %v2651 = vsel %vm63, %v2649, 0.0
  %2652 = vadd.xlane.f32.xlu0 %v2651
  %v2653 = vpop.xlane.xlu0 %2652
  %v2654 = vsel %vm63, %v2650, 0.0
  %2655 = vadd.xlane.f32.xlu0 %v2654
  %v2656 = vpop.xlane.xlu0 %2655
  %v2657 = vmul.f32 %v2653, %v76
  %v2658 = vmul.f32 %v2656, %v76
  %v2659 = vadd.f32 %v2657, 1e-05
  %v2660 = vadd.f32 %v2658, 1e-05
  %v2661 = vrsqrt.pop %v2659
  %v2662 = vmul.f32 %v2661, %v2659
  %v2663 = vmul.f32 %v2662, %v2661
  %v2664 = vmul.f32 0.5, %v2663
  %v2665 = vsub.f32 1.5, %v2664
  %v2666 = vmul.f32 %v2661, %v2665
  %vm2667 = vweird.f32 %v2659
  %vm2668 = vweird.f32 %v2661
  %vm2669 = vmor %vm2667, %vm2668
  %v2670 = vsel %vm2669, %v2661, %v2666
  %v2671 = vrsqrt.pop %v2660
  %v2672 = vmul.f32 %v2671, %v2660
  %v2673 = vmul.f32 %v2672, %v2671
  %v2674 = vmul.f32 0.5, %v2673
  %v2675 = vsub.f32 1.5, %v2674
  %v2676 = vmul.f32 %v2671, %v2675
  %vm2677 = vweird.f32 %v2660
  %vm2678 = vweird.f32 %v2671
  %vm2679 = vmor %vm2677, %vm2678
  %v2680 = vsel %vm2679, %v2671, %v2676
  %v2681 = vmul.f32 %v2647, %v2670
  %v2682 = vmul.f32 %v2648, %v2680
  %v2684 = vperm.slane %v2637, 0
  %v2686 = vmul.f32 %v2681, %v2684
  %v2687 = vmul.f32 %v2682, %v2684
  %v2689 = vperm.slane %v2638, 0
  %v2691 = vadd.f32 %v2686, %v2689
  %v2692 = vadd.f32 %v2687, %v2689
  %v2693 = vpack.c.bf16 %v2692, %v2691
  %v2694 = vld [vmem:[%s16] sm:$0xf]
  %v2695 = vld [vmem:[%s16 + $0x4] sm:$0xf]
  %v2696 = vld [vmem:[%s16 + $0x8] sm:$0xf]
  %v2697 = vld [vmem:[%s16 + $0xc] sm:$0xf]
  %v2702 = vunpack.c.l.b16 %v2694
  %v2703 = vunpack.c.l.b16 %v2695
  %v2704 = vunpack.c.l.b16 %v2696
  %v2705 = vunpack.c.l.b16 %v2697
  %v2706 = vpack.c.b16 %v2703, %v2702
  %v2707 = vpack.c.b16 %v2705, %v2704
  %v2711 = vsel %vm63, %v2693, 0
  %2713 = vmatpush.bf16.msra.mxu0 0
  %2714 = vmatpush.bf16.msra.mxu0 0
  %2715 = vmatpush.bf16.msra.mxu0 0
  %2716 = vmatpush.bf16.msra.mxu0 0
  %2717 = vmatpush.bf16.msra.mxu0 0
  %2718 = vmatpush.bf16.msra.mxu0 0
  %2719 = vmatpush.bf16.msra.mxu0 %v2707
  %2720 = vmatpush.bf16.msra.mxu0 %v2706
  %2721 = vmatmul.bf16.gmra.mxu0 %v2711
  %v2722 = vpop.f32.mrf.mxu0
  %v2723 = vadd.f32 0.0, %v2722
  %v2724 = vpop.f32.mrf.mxu0
  %v2725 = vadd.f32 0.0, %v2724
  %2726 = vdwg.mxu0
  %2727 = vst [vmem:[%s17] sm:$0xff] %v2723
  %2728 = vst [vmem:[%s17 + $0x8] sm:$0xff] %v2725
  // Predicated region
  $region70: #{gpt2_forward.1} parent=0 // pred_check
    _
  $region71: #{gpt2_forward.1} parent=0 // pred_check_branch
    %2730 = sbr.rel (0) target = $region73
  $region72: #{gpt2_forward.1} parent=0 // pred_region
    _
  $region73: #{gpt2_forward.1} parent=0 // pred_fallthru
    _
  // Predicated region
  $region74: #{gpt2_forward.1} parent=0 // pred_check
    _
  $region75: #{gpt2_forward.1} parent=0 // pred_check_branch
    %2732 = sbr.rel (0) target = $region77
  $region76: #{gpt2_forward.1} parent=0 // pred_region
    _
  $region77: #{gpt2_forward.1} parent=0 // pred_fallthru
    _

</llo_original>
